<compile_context>
chip_gen: v5e
topology: v5e:2x2
jax: 0.10.0
libtpu: 0.0.40
codegen_flags: <defaults>
</compile_context>

<pallas_src>
import math

import jax
import jax.numpy as jnp
from jax import lax
from jax.experimental import pallas as pl
from jax.experimental.pallas import tpu as pltpu

# ---------------- model config (small, consistent with the module) ----------
B = 2           # batch
T = 8           # context_length
C = 32          # embedding_size
H = 4           # num_heads
DH = C // H     # single_head_dim
FF = 4 * C      # feed-forward hidden
EPS = 1e-5      # nn.LayerNorm default eps

DOT_DTYPE = jnp.bfloat16   # MXU input dtype (f32 accumulation everywhere)
NEG_BIG = -1e30            # additive mask value (safer/faster than -inf + where)
SCALE = 1.0 / math.sqrt(DH)


def block_kernel(x_ref, xh_ref,
                 ln1w_ref, ln1b_ref,
                 wq_ref, wk_ref, wv_ref, wo_ref,
                 ln2w_ref, ln2b_ref,
                 w1_ref, b1_ref, w2_ref, b2_ref,
                 o_ref):
    # One batch element per grid step.
    x = x_ref[0]            # (T, C)      f32 token-major view: LN stats, residual, FF
    xh = xh_ref[0]          # (H, T, DH)  f32 head-major view : attention path

    # ----- LayerNorm 1: stats from (T, C), applied in head-major layout -----
    mu = jnp.mean(x, axis=-1, keepdims=True)                      # (T, 1)
    var = jnp.mean((x - mu) ** 2, axis=-1, keepdims=True)
    inv = lax.rsqrt(var + EPS)                                    # (T, 1)
    mu3 = mu.reshape(1, T, 1)
    inv3 = inv.reshape(1, T, 1)
    xn_h = (xh - mu3) * inv3 * ln1w_ref[...] + ln1b_ref[...]      # (H, T, DH) f32

    # ----- Q/K/V: shared (DH, DH) weights, one flat matmul each (cast once) -----
    xn_flat = xn_h.reshape(H * T, DH).astype(DOT_DTYPE)           # (H*T, DH)
    q = jnp.dot(xn_flat, wq_ref[...], preferred_element_type=jnp.float32)
    k = jnp.dot(xn_flat, wk_ref[...], preferred_element_type=jnp.float32)
    v = jnp.dot(xn_flat, wv_ref[...], preferred_element_type=jnp.float32)
    q_c = q.reshape(H, T, DH).astype(DOT_DTYPE)
    k_c = k.reshape(H, T, DH).astype(DOT_DTYPE)
    v_c = v.reshape(H, T, DH).astype(DOT_DTYPE)

    # ----- scores: one head-batched dot; causal mask built in-kernel -----
    s = jnp.einsum('hqd,hkd->hqk', q_c, k_c,
                   preferred_element_type=jnp.float32)            # (H, T, T)
    row = lax.broadcasted_iota(jnp.int32, (T, T), 0)
    col = lax.broadcasted_iota(jnp.int32, (T, T), 1)
    mask = jnp.where(row >= col, 0.0, NEG_BIG).astype(jnp.float32)
    s = s * SCALE + mask[None, :, :]

    # ----- softmax over keys (f32 vector math) -----
    m = jnp.max(s, axis=-1, keepdims=True)
    e = jnp.exp(s - m)
    l = jnp.sum(e, axis=-1, keepdims=True)
    p_c = (e * pl.reciprocal(l, approx=False)).astype(DOT_DTYPE)
    # attn_dropout -> identity (eval)

    # ----- attended values folded through Wout (head-batched, no lane concat) -----
    av = jnp.einsum('hqk,hkd->hqd', p_c, v_c,
                    preferred_element_type=jnp.float32)           # (H, T, DH)
    head_out = jnp.einsum('htd,hdc->htc', av.astype(DOT_DTYPE), wo_ref[...],
                          preferred_element_type=jnp.float32)     # (H, T, C)
    attn_out = jnp.sum(head_out, axis=0)                          # (T, C)
    # embed_dropout -> identity (eval)

    x1 = x + attn_out                                             # residual 1

    # ----- LayerNorm 2 + FeedForward -----
    mu2 = jnp.mean(x1, axis=-1, keepdims=True)
    var2 = jnp.mean((x1 - mu2) ** 2, axis=-1, keepdims=True)
    x1n = (x1 - mu2) * lax.rsqrt(var2 + EPS) * ln2w_ref[...] + ln2b_ref[...]
    hdn = jnp.dot(x1n.astype(DOT_DTYPE), w1_ref[...],
                  preferred_element_type=jnp.float32) + b1_ref[...]   # (T, FF)
    hdn = jnp.maximum(hdn, 0.0)
    ff = jnp.dot(hdn.astype(DOT_DTYPE), w2_ref[...],
                 preferred_element_type=jnp.float32) + b2_ref[...]    # (T, C)
    # ff dropout -> identity (eval)

    o_ref[0] = (x1 + ff).astype(o_ref.dtype)


def prepare_params(params):
    """One-time weight preparation (run once at setup, NOT on the per-call path):
    transposes, per-head reshapes, bf16 casts."""
    (ln1_w, ln1_b, wq, wk, wv, wo, ln2_w, ln2_b, w1, b1, w2, b2) = params
    return (
        ln1_w.reshape(H, 1, DH).astype(jnp.float32),   # LN1 gamma, head-major
        ln1_b.reshape(H, 1, DH).astype(jnp.float32),   # LN1 beta,  head-major
        wq.T.astype(DOT_DTYPE),                        # (DH, DH)
        wk.T.astype(DOT_DTYPE),
        wv.T.astype(DOT_DTYPE),
        wo.T.reshape(H, DH, C).astype(DOT_DTYPE),      # (H, DH, C): Wout.T split per head
        ln2_w.astype(jnp.float32),                     # (1, C)
        ln2_b.astype(jnp.float32),
        w1.T.astype(DOT_DTYPE),                        # (C, FF)
        b1.astype(jnp.float32),                        # (1, FF)
        w2.T.astype(DOT_DTYPE),                        # (FF, C)
        b2.astype(jnp.float32),                        # (1, C)
    )


def _full(shape):
    nd = len(shape)
    return pl.BlockSpec(shape, lambda b, nd=nd: (0,) * nd)


@jax.jit
def casual_attention_block(x, prepped):
    (ln1_w_h, ln1_b_h, wqT, wkT, wvT, wo3, ln2_w, ln2_b, w1T, b1, w2T, b2) = prepped

    # Head-major activation view (wrapper-side layout plumbing so the kernel needs
    # no in-kernel lane<->sublane relayout after LayerNorm; x is only ~2 KB here).
    xh = jnp.transpose(x.reshape(B, T, H, DH), (0, 2, 1, 3))      # (B, H, T, DH)

    out = pl.pallas_call(
        block_kernel,
        out_shape=jax.ShapeDtypeStruct((B, T, C), x.dtype),
        grid=(B,),
        in_specs=[
            pl.BlockSpec((1, T, C), lambda b: (b, 0, 0)),         # x, token-major
            pl.BlockSpec((1, H, T, DH), lambda b: (b, 0, 0, 0)),  # x, head-major
            _full((H, 1, DH)), _full((H, 1, DH)),                 # LN1 gamma, beta
            _full((DH, DH)), _full((DH, DH)), _full((DH, DH)),    # WqT, WkT, WvT
            _full((H, DH, C)),                                    # WoutT per head
            _full((1, C)), _full((1, C)),                         # LN2 gamma, beta
            _full((C, FF)), _full((1, FF)),                       # W1T, b1
            _full((FF, C)), _full((1, C)),                        # W2T, b2
        ],
        out_specs=pl.BlockSpec((1, T, C), lambda b: (b, 0, 0)),
        compiler_params=pltpu.CompilerParams(
            dimension_semantics=("parallel",)),                   # batch across TCs (v7x)
    )(x, xh, ln1_w_h, ln1_b_h, wqT, wkT, wvT, wo3,
      ln2_w, ln2_b, w1T, b1, w2T, b2)
    return out


# ---------------- pure-JAX reference (module semantics) ----------------------
def reference(x, params, dot_dtype=jnp.float32):
    """dot_dtype=f32 -> exact module semantics; dot_dtype=bf16 -> same MXU-input
    numerics as the kernel (f32 accumulation, f32 vector math)."""
    (ln1_w, ln1_b, wq, wk, wv, wo, ln2_w, ln2_b, w1, b1, w2, b2) = params
    f32 = jnp.float32
    c = lambda a: a.astype(dot_dtype)

    def ln(x, w, b):
        mu = jnp.mean(x, axis=-1, keepdims=True)
        var = jnp.mean((x - mu) ** 2, axis=-1, keepdims=True)
        return (x - mu) / jnp.sqrt(var + EPS) * w + b

    xn = ln(x, ln1_w, ln1_b)
    xhr = xn.reshape(B, T, H, DH)
    q = jnp.einsum('bthd,ed->bthe', c(xhr), c(wq), preferred_element_type=f32)
    k = jnp.einsum('bthd,ed->bthe', c(xhr), c(wk), preferred_element_type=f32)
    v = jnp.einsum('bthd,ed->bthe', c(xhr), c(wv), preferred_element_type=f32)
    s = jnp.einsum('bthd,bshd->bhts', c(q), c(k),
                   preferred_element_type=f32) / math.sqrt(DH)
    tril = jnp.tril(jnp.ones((T, T), bool))
    s = jnp.where(tril, s, -jnp.inf)
    p = jax.nn.softmax(s, axis=-1)
    av = jnp.einsum('bhts,bshd->bthd', c(p), c(v), preferred_element_type=f32)
    av = av.reshape(B, T, C)
    attn_out = jnp.einsum('btc,dc->btd', c(av), c(wo), preferred_element_type=f32)
    x1 = x + attn_out
    x1n = ln(x1, ln2_w, ln2_b)
    hdn = jnp.maximum(jnp.einsum('btc,fc->btf', c(x1n), c(w1),
                                 preferred_element_type=f32) + b1, 0.0)
    ff = jnp.einsum('btf,cf->btc', c(hdn), c(w2), preferred_element_type=f32) + b2
    return x1 + ff


if __name__ == "__main__":
    key = jax.random.PRNGKey(0)
    ks = jax.random.split(key, 16)

    x = jax.random.normal(ks[0], (B, T, C), jnp.float32)

    # deterministic synthetic parameters (PyTorch-style weight shapes)
    ln1_w = 1.0 + 0.1 * jax.random.normal(ks[1], (1, C), jnp.float32)
    ln1_b = 0.1 * jax.random.normal(ks[2], (1, C), jnp.float32)
    wq = jax.random.normal(ks[3], (DH, DH), jnp.float32) / math.sqrt(DH)
    wk = jax.random.normal(ks[4], (DH, DH), jnp.float32) / math.sqrt(DH)
    wv = jax.random.normal(ks[5], (DH, DH), jnp.float32) / math.sqrt(DH)
    wo = jax.random.normal(ks[6], (C, C), jnp.float32) / math.sqrt(C)
    ln2_w = 1.0 + 0.1 * jax.random.normal(ks[7], (1, C), jnp.float32)
    ln2_b = 0.1 * jax.random.normal(ks[8], (1, C), jnp.float32)
    w1 = jax.random.normal(ks[9], (FF, C), jnp.float32) / math.sqrt(C)
    b1 = 0.1 * jax.random.normal(ks[10], (1, FF), jnp.float32)
    w2 = jax.random.normal(ks[11], (C, FF), jnp.float32) / math.sqrt(FF)
    b2 = 0.1 * jax.random.normal(ks[12], (1, C), jnp.float32)

    params = (ln1_w, ln1_b, wq, wk, wv, wo, ln2_w, ln2_b, w1, b1, w2, b2)

    # TODO(synk): dropout layers run in eval mode (identity); no RNG dropout in-kernel.
    prepped = prepare_params(params)          # one-time weight prep (not per-call)
    out = jax.block_until_ready(casual_attention_block(x, prepped))
    assert out.shape == (B, T, C)

    # tight check vs a reference using the same bf16-at-the-MXU numerics as the kernel
    ref_match = reference(x, params, dot_dtype=DOT_DTYPE)
    assert jnp.allclose(out, ref_match, atol=3e-2, rtol=3e-2), \
        float(jnp.max(jnp.abs(out - ref_match)))

    # sanity check vs the exact fp32 module semantics (bf16 MXU inputs => loose tol)
    ref_f32 = reference(x, params, dot_dtype=jnp.float32)
    assert jnp.allclose(out, ref_f32, atol=1e-1, rtol=1e-1), \
        float(jnp.max(jnp.abs(out - ref_f32)))

    print("KERNEL_OK")
</pallas_src>

<mosaic_0001>
module attributes {stable_mosaic.version = 11 : i64} {
  func.func @block_kernel(%arg0: i32, %arg1: memref<1x8x32xf32, #tpu.memory_space<vmem>>, %arg2: memref<1x4x8x8xf32, #tpu.memory_space<vmem>>, %arg3: memref<4x1x8xf32, #tpu.memory_space<vmem>>, %arg4: memref<4x1x8xf32, #tpu.memory_space<vmem>>, %arg5: memref<8x8xbf16, #tpu.memory_space<vmem>>, %arg6: memref<8x8xbf16, #tpu.memory_space<vmem>>, %arg7: memref<8x8xbf16, #tpu.memory_space<vmem>>, %arg8: memref<4x8x32xbf16, #tpu.memory_space<vmem>>, %arg9: memref<1x32xf32, #tpu.memory_space<vmem>>, %arg10: memref<1x32xf32, #tpu.memory_space<vmem>>, %arg11: memref<32x128xbf16, #tpu.memory_space<vmem>>, %arg12: memref<1x128xf32, #tpu.memory_space<vmem>>, %arg13: memref<128x32xbf16, #tpu.memory_space<vmem>>, %arg14: memref<1x32xf32, #tpu.memory_space<vmem>>, %arg15: memref<1x8x32xf32, #tpu.memory_space<vmem>>) attributes {dimension_semantics = [#tpu.dimension_semantics<parallel>], iteration_bounds = array<i64: 2>, scalar_prefetch = 0 : i64, scratch_operands = 0 : i64, tpu.core_type = #tpu.core_type<tc>, window_params = [{transform_indices = @transform_0, window_bounds = array<i64: 1, 8, 32>}, {transform_indices = @transform_1, window_bounds = array<i64: 1, 4, 8, 8>}, {pipeline_mode = #tpu.pipeline_mode<synchronous>, transform_indices = @transform_2, window_bounds = array<i64: 4, 1, 8>}, {pipeline_mode = #tpu.pipeline_mode<synchronous>, transform_indices = @transform_3, window_bounds = array<i64: 4, 1, 8>}, {pipeline_mode = #tpu.pipeline_mode<synchronous>, transform_indices = @transform_4, window_bounds = array<i64: 8, 8>}, {pipeline_mode = #tpu.pipeline_mode<synchronous>, transform_indices = @transform_5, window_bounds = array<i64: 8, 8>}, {pipeline_mode = #tpu.pipeline_mode<synchronous>, transform_indices = @transform_6, window_bounds = array<i64: 8, 8>}, {pipeline_mode = #tpu.pipeline_mode<synchronous>, transform_indices = @transform_7, window_bounds = array<i64: 4, 8, 32>}, {pipeline_mode = #tpu.pipeline_mode<synchronous>, transform_indices = @transform_8, window_bounds = array<i64: 1, 32>}, {pipeline_mode = #tpu.pipeline_mode<synchronous>, transform_indices = @transform_9, window_bounds = array<i64: 1, 32>}, {pipeline_mode = #tpu.pipeline_mode<synchronous>, transform_indices = @transform_10, window_bounds = array<i64: 32, 128>}, {pipeline_mode = #tpu.pipeline_mode<synchronous>, transform_indices = @transform_11, window_bounds = array<i64: 1, 128>}, {pipeline_mode = #tpu.pipeline_mode<synchronous>, transform_indices = @transform_12, window_bounds = array<i64: 128, 32>}, {pipeline_mode = #tpu.pipeline_mode<synchronous>, transform_indices = @transform_13, window_bounds = array<i64: 1, 32>}, {transform_indices = @transform_14, window_bounds = array<i64: 1, 8, 32>}]} {
    %c0 = arith.constant 0 : index
    %c0_0 = arith.constant 0 : index
    %c0_1 = arith.constant 0 : index
    %0 = vector.load %arg1[%c0, %c0_0, %c0_1] : memref<1x8x32xf32, #tpu.memory_space<vmem>>, vector<1x8x32xf32>
    %1 = vector.shape_cast %0 : vector<1x8x32xf32> to vector<8x32xf32>
    %c0_2 = arith.constant 0 : index
    %c0_3 = arith.constant 0 : index
    %c0_4 = arith.constant 0 : index
    %c0_5 = arith.constant 0 : index
    %2 = vector.load %arg2[%c0_2, %c0_3, %c0_4, %c0_5] : memref<1x4x8x8xf32, #tpu.memory_space<vmem>>, vector<1x4x8x8xf32>
    %3 = vector.shape_cast %2 : vector<1x4x8x8xf32> to vector<4x8x8xf32>
    %cst = arith.constant dense<0.000000e+00> : vector<8xf32>
    %4 = vector.multi_reduction <add>, %1, %cst [1] : vector<8x32xf32> to vector<8xf32>
    %5 = vector.shape_cast %4 : vector<8xf32> to vector<8x1xf32>
    %cst_6 = arith.constant 3.200000e+01 : f32
    %6 = vector.broadcast %cst_6 : f32 to vector<8x1xf32>
    %7 = arith.divf %5, %6 : vector<8x1xf32>
    %8 = vector.broadcast %7 : vector<8x1xf32> to vector<8x32xf32>
    %9 = arith.subf %1, %8 : vector<8x32xf32>
    %10 = arith.mulf %9, %9 : vector<8x32xf32>
    %cst_7 = arith.constant dense<0.000000e+00> : vector<8xf32>
    %11 = vector.multi_reduction <add>, %10, %cst_7 [1] : vector<8x32xf32> to vector<8xf32>
    %12 = vector.shape_cast %11 : vector<8xf32> to vector<8x1xf32>
    %cst_8 = arith.constant 3.200000e+01 : f32
    %13 = vector.broadcast %cst_8 : f32 to vector<8x1xf32>
    %14 = arith.divf %12, %13 : vector<8x1xf32>
    %cst_9 = arith.constant 9.99999974E-6 : f32
    %15 = vector.broadcast %cst_9 : f32 to vector<8x1xf32>
    %16 = arith.addf %14, %15 : vector<8x1xf32>
    %17 = math.rsqrt %16 : vector<8x1xf32>
    %18 = vector.shape_cast %7 : vector<8x1xf32> to vector<1x8x1xf32>
    %19 = vector.shape_cast %17 : vector<8x1xf32> to vector<1x8x1xf32>
    %20 = vector.broadcast %18 : vector<1x8x1xf32> to vector<4x8x8xf32>
    %21 = arith.subf %3, %20 : vector<4x8x8xf32>
    %22 = vector.broadcast %19 : vector<1x8x1xf32> to vector<4x8x8xf32>
    %23 = arith.mulf %21, %22 : vector<4x8x8xf32>
    %c0_10 = arith.constant 0 : index
    %c0_11 = arith.constant 0 : index
    %c0_12 = arith.constant 0 : index
    %24 = vector.load %arg3[%c0_10, %c0_11, %c0_12] : memref<4x1x8xf32, #tpu.memory_space<vmem>>, vector<4x1x8xf32>
    %25 = vector.broadcast %24 : vector<4x1x8xf32> to vector<4x8x8xf32>
    %26 = arith.mulf %23, %25 : vector<4x8x8xf32>
    %c0_13 = arith.constant 0 : index
    %c0_14 = arith.constant 0 : index
    %c0_15 = arith.constant 0 : index
    %27 = vector.load %arg4[%c0_13, %c0_14, %c0_15] : memref<4x1x8xf32, #tpu.memory_space<vmem>>, vector<4x1x8xf32>
    %28 = vector.broadcast %27 : vector<4x1x8xf32> to vector<4x8x8xf32>
    %29 = arith.addf %26, %28 : vector<4x8x8xf32>
    %30 = vector.shape_cast %29 : vector<4x8x8xf32> to vector<32x8xf32>
    %31 = arith.truncf %30 : vector<32x8xf32> to vector<32x8xbf16>
    %c0_16 = arith.constant 0 : index
    %c0_17 = arith.constant 0 : index
    %32 = vector.load %arg5[%c0_16, %c0_17] : memref<8x8xbf16, #tpu.memory_space<vmem>>, vector<8x8xbf16>
    %cst_18 = arith.constant dense<0.000000e+00> : vector<32x8xf32>
    %33 = tpu.matmul %31, %32, %cst_18 {dimension_numbers = #tpu.dot_dimension_numbers<[1], [0], [0], [1], [0, 0, 1, 1], [], []>} : vector<32x8xbf16>, vector<8x8xbf16>, vector<32x8xf32> -> vector<32x8xf32>
    %c0_19 = arith.constant 0 : index
    %c0_20 = arith.constant 0 : index
    %34 = vector.load %arg6[%c0_19, %c0_20] : memref<8x8xbf16, #tpu.memory_space<vmem>>, vector<8x8xbf16>
    %cst_21 = arith.constant dense<0.000000e+00> : vector<32x8xf32>
    %35 = tpu.matmul %31, %34, %cst_21 {dimension_numbers = #tpu.dot_dimension_numbers<[1], [0], [0], [1], [0, 0, 1, 1], [], []>} : vector<32x8xbf16>, vector<8x8xbf16>, vector<32x8xf32> -> vector<32x8xf32>
    %c0_22 = arith.constant 0 : index
    %c0_23 = arith.constant 0 : index
    %36 = vector.load %arg7[%c0_22, %c0_23] : memref<8x8xbf16, #tpu.memory_space<vmem>>, vector<8x8xbf16>
    %cst_24 = arith.constant dense<0.000000e+00> : vector<32x8xf32>
    %37 = tpu.matmul %31, %36, %cst_24 {dimension_numbers = #tpu.dot_dimension_numbers<[1], [0], [0], [1], [0, 0, 1, 1], [], []>} : vector<32x8xbf16>, vector<8x8xbf16>, vector<32x8xf32> -> vector<32x8xf32>
    %38 = vector.shape_cast %33 : vector<32x8xf32> to vector<4x8x8xf32>
    %39 = arith.truncf %38 : vector<4x8x8xf32> to vector<4x8x8xbf16>
    %40 = vector.shape_cast %35 : vector<32x8xf32> to vector<4x8x8xf32>
    %41 = arith.truncf %40 : vector<4x8x8xf32> to vector<4x8x8xbf16>
    %42 = vector.shape_cast %37 : vector<32x8xf32> to vector<4x8x8xf32>
    %43 = arith.truncf %42 : vector<4x8x8xf32> to vector<4x8x8xbf16>
    "tpu.trace_start"() <{level = 10 : i32, message = "hqd,hkd->hqk"}> : () -> ()
    %cst_25 = arith.constant dense<0.000000e+00> : vector<4x8x8xf32>
    %44 = tpu.matmul %39, %41, %cst_25 {dimension_numbers = #tpu.dot_dimension_numbers<[2], [2], [1], [1], [0, 0, 0, 1, 1, 1], [0], [0]>} : vector<4x8x8xbf16>, vector<4x8x8xbf16>, vector<4x8x8xf32> -> vector<4x8x8xf32>
    "tpu.trace_stop"() : () -> ()
    %45 = tpu.iota {dimensions = array<i32: 0>} : vector<8x8xi32>
    %46 = tpu.iota {dimensions = array<i32: 1>} : vector<8x8xi32>
    %47 = arith.cmpi sge, %45, %46 : vector<8x8xi32>
    %cst_26 = arith.constant 0.000000e+00 : f32
    %cst_27 = arith.constant -1.000000e+30 : f32
    %48 = vector.broadcast %cst_26 : f32 to vector<8x8xf32>
    %49 = vector.broadcast %cst_27 : f32 to vector<8x8xf32>
    %50 = arith.select %47, %48, %49 : vector<8x8xi1>, vector<8x8xf32>
    %cst_28 = arith.constant 0.353553385 : f32
    %51 = vector.broadcast %cst_28 : f32 to vector<4x8x8xf32>
    %52 = arith.mulf %44, %51 : vector<4x8x8xf32>
    %53 = vector.shape_cast %50 : vector<8x8xf32> to vector<1x8x8xf32>
    %54 = vector.broadcast %53 : vector<1x8x8xf32> to vector<4x8x8xf32>
    %55 = arith.addf %52, %54 : vector<4x8x8xf32>
    %cst_29 = arith.constant dense<0xFF800000> : vector<4x8xf32>
    %56 = vector.multi_reduction <maximumf>, %55, %cst_29 [2] : vector<4x8x8xf32> to vector<4x8xf32>
    %57 = vector.shape_cast %56 : vector<4x8xf32> to vector<4x8x1xf32>
    %58 = vector.broadcast %57 : vector<4x8x1xf32> to vector<4x8x8xf32>
    %59 = arith.subf %55, %58 : vector<4x8x8xf32>
    %60 = math.exp %59 : vector<4x8x8xf32>
    %cst_30 = arith.constant dense<0.000000e+00> : vector<4x8xf32>
    %61 = vector.multi_reduction <add>, %60, %cst_30 [2] : vector<4x8x8xf32> to vector<4x8xf32>
    %62 = vector.shape_cast %61 : vector<4x8xf32> to vector<4x8x1xf32>
    %63 = tpu.reciprocal %62 : vector<4x8x1xf32> -> vector<4x8x1xf32>
    %64 = vector.broadcast %63 : vector<4x8x1xf32> to vector<4x8x8xf32>
    %65 = arith.mulf %60, %64 : vector<4x8x8xf32>
    %66 = arith.truncf %65 : vector<4x8x8xf32> to vector<4x8x8xbf16>
    "tpu.trace_start"() <{level = 10 : i32, message = "hqk,hkd->hqd"}> : () -> ()
    %cst_31 = arith.constant dense<0.000000e+00> : vector<4x8x8xf32>
    %67 = tpu.matmul %66, %43, %cst_31 {dimension_numbers = #tpu.dot_dimension_numbers<[2], [1], [1], [2], [0, 0, 0, 1, 1, 2], [0], [0]>} : vector<4x8x8xbf16>, vector<4x8x8xbf16>, vector<4x8x8xf32> -> vector<4x8x8xf32>
    "tpu.trace_stop"() : () -> ()
    %68 = arith.truncf %67 : vector<4x8x8xf32> to vector<4x8x8xbf16>
    %c0_32 = arith.constant 0 : index
    %c0_33 = arith.constant 0 : index
    %c0_34 = arith.constant 0 : index
    %69 = vector.load %arg8[%c0_32, %c0_33, %c0_34] : memref<4x8x32xbf16, #tpu.memory_space<vmem>>, vector<4x8x32xbf16>
    "tpu.trace_start"() <{level = 10 : i32, message = "htd,hdc->htc"}> : () -> ()
    %cst_35 = arith.constant dense<0.000000e+00> : vector<4x8x32xf32>
    %70 = tpu.matmul %68, %69, %cst_35 {dimension_numbers = #tpu.dot_dimension_numbers<[2], [1], [1], [2], [0, 0, 0, 1, 1, 2], [0], [0]>} : vector<4x8x8xbf16>, vector<4x8x32xbf16>, vector<4x8x32xf32> -> vector<4x8x32xf32>
    "tpu.trace_stop"() : () -> ()
    %cst_36 = arith.constant dense<0.000000e+00> : vector<8x32xf32>
    %71 = vector.multi_reduction <add>, %70, %cst_36 [0] : vector<4x8x32xf32> to vector<8x32xf32>
    %72 = arith.addf %1, %71 : vector<8x32xf32>
    %cst_37 = arith.constant dense<0.000000e+00> : vector<8xf32>
    %73 = vector.multi_reduction <add>, %72, %cst_37 [1] : vector<8x32xf32> to vector<8xf32>
    %74 = vector.shape_cast %73 : vector<8xf32> to vector<8x1xf32>
    %cst_38 = arith.constant 3.200000e+01 : f32
    %75 = vector.broadcast %cst_38 : f32 to vector<8x1xf32>
    %76 = arith.divf %74, %75 : vector<8x1xf32>
    %77 = vector.broadcast %76 : vector<8x1xf32> to vector<8x32xf32>
    %78 = arith.subf %72, %77 : vector<8x32xf32>
    %79 = arith.mulf %78, %78 : vector<8x32xf32>
    %cst_39 = arith.constant dense<0.000000e+00> : vector<8xf32>
    %80 = vector.multi_reduction <add>, %79, %cst_39 [1] : vector<8x32xf32> to vector<8xf32>
    %81 = vector.shape_cast %80 : vector<8xf32> to vector<8x1xf32>
    %cst_40 = arith.constant 3.200000e+01 : f32
    %82 = vector.broadcast %cst_40 : f32 to vector<8x1xf32>
    %83 = arith.divf %81, %82 : vector<8x1xf32>
    %84 = vector.broadcast %76 : vector<8x1xf32> to vector<8x32xf32>
    %85 = arith.subf %72, %84 : vector<8x32xf32>
    %cst_41 = arith.constant 9.99999974E-6 : f32
    %86 = vector.broadcast %cst_41 : f32 to vector<8x1xf32>
    %87 = arith.addf %83, %86 : vector<8x1xf32>
    %88 = math.rsqrt %87 : vector<8x1xf32>
    %89 = vector.broadcast %88 : vector<8x1xf32> to vector<8x32xf32>
    %90 = arith.mulf %85, %89 : vector<8x32xf32>
    %c0_42 = arith.constant 0 : index
    %c0_43 = arith.constant 0 : index
    %91 = vector.load %arg9[%c0_42, %c0_43] : memref<1x32xf32, #tpu.memory_space<vmem>>, vector<1x32xf32>
    %92 = vector.broadcast %91 : vector<1x32xf32> to vector<8x32xf32>
    %93 = arith.mulf %90, %92 : vector<8x32xf32>
    %c0_44 = arith.constant 0 : index
    %c0_45 = arith.constant 0 : index
    %94 = vector.load %arg10[%c0_44, %c0_45] : memref<1x32xf32, #tpu.memory_space<vmem>>, vector<1x32xf32>
    %95 = vector.broadcast %94 : vector<1x32xf32> to vector<8x32xf32>
    %96 = arith.addf %93, %95 : vector<8x32xf32>
    %97 = arith.truncf %96 : vector<8x32xf32> to vector<8x32xbf16>
    %c0_46 = arith.constant 0 : index
    %c0_47 = arith.constant 0 : index
    %98 = vector.load %arg11[%c0_46, %c0_47] : memref<32x128xbf16, #tpu.memory_space<vmem>>, vector<32x128xbf16>
    %cst_48 = arith.constant dense<0.000000e+00> : vector<8x128xf32>
    %99 = tpu.matmul %97, %98, %cst_48 {dimension_numbers = #tpu.dot_dimension_numbers<[1], [0], [0], [1], [0, 0, 1, 1], [], []>} : vector<8x32xbf16>, vector<32x128xbf16>, vector<8x128xf32> -> vector<8x128xf32>
    %c0_49 = arith.constant 0 : index
    %c0_50 = arith.constant 0 : index
    %100 = vector.load %arg12[%c0_49, %c0_50] : memref<1x128xf32, #tpu.memory_space<vmem>>, vector<1x128xf32>
    %101 = vector.broadcast %100 : vector<1x128xf32> to vector<8x128xf32>
    %102 = arith.addf %99, %101 : vector<8x128xf32>
    %cst_51 = arith.constant 0.000000e+00 : f32
    %103 = vector.broadcast %cst_51 : f32 to vector<8x128xf32>
    %104 = arith.maximumf %102, %103 : vector<8x128xf32>
    %105 = arith.truncf %104 : vector<8x128xf32> to vector<8x128xbf16>
    %c0_52 = arith.constant 0 : index
    %c0_53 = arith.constant 0 : index
    %106 = vector.load %arg13[%c0_52, %c0_53] : memref<128x32xbf16, #tpu.memory_space<vmem>>, vector<128x32xbf16>
    %cst_54 = arith.constant dense<0.000000e+00> : vector<8x32xf32>
    %107 = tpu.matmul %105, %106, %cst_54 {dimension_numbers = #tpu.dot_dimension_numbers<[1], [0], [0], [1], [0, 0, 1, 1], [], []>} : vector<8x128xbf16>, vector<128x32xbf16>, vector<8x32xf32> -> vector<8x32xf32>
    %c0_55 = arith.constant 0 : index
    %c0_56 = arith.constant 0 : index
    %108 = vector.load %arg14[%c0_55, %c0_56] : memref<1x32xf32, #tpu.memory_space<vmem>>, vector<1x32xf32>
    %109 = vector.broadcast %108 : vector<1x32xf32> to vector<8x32xf32>
    %110 = arith.addf %107, %109 : vector<8x32xf32>
    %111 = arith.addf %72, %110 : vector<8x32xf32>
    %c0_57 = arith.constant 0 : index
    %c0_58 = arith.constant 0 : index
    %c0_59 = arith.constant 0 : index
    %112 = vector.load %arg15[%c0_57, %c0_58, %c0_59] : memref<1x8x32xf32, #tpu.memory_space<vmem>>, vector<1x8x32xf32>
    %113 = vector.shape_cast %112 : vector<1x8x32xf32> to vector<8x32xf32>
    %114 = vector.shape_cast %111 : vector<8x32xf32> to vector<1x8x32xf32>
    tpu.vector_store %arg15[%c0_57, %c0_58, %c0_59], %114 {strides = array<i32>} : memref<1x8x32xf32, #tpu.memory_space<vmem>>, vector<1x8x32xf32>,
    return
  }
  func.func @transform_0(%arg0: i32) -> (i32, i32, i32) {
    %c0_i32 = arith.constant 0 : i32
    %c0_i32_0 = arith.constant 0 : i32
    %c0_i32_1 = arith.constant 0 : i32
    return %arg0, %c0_i32, %c0_i32_0 : i32, i32, i32
  }
  func.func @transform_1(%arg0: i32) -> (i32, i32, i32, i32) {
    %c0_i32 = arith.constant 0 : i32
    %c0_i32_0 = arith.constant 0 : i32
    %c0_i32_1 = arith.constant 0 : i32
    %c0_i32_2 = arith.constant 0 : i32
    return %arg0, %c0_i32, %c0_i32_0, %c0_i32_1 : i32, i32, i32, i32
  }
  func.func @transform_2(%arg0: i32) -> (i32, i32, i32) {
    %c0_i32 = arith.constant 0 : i32
    %c0_i32_0 = arith.constant 0 : i32
    %c0_i32_1 = arith.constant 0 : i32
    %c0_i32_2 = arith.constant 0 : i32
    return %c0_i32, %c0_i32_0, %c0_i32_1 : i32, i32, i32
  }
  func.func @transform_3(%arg0: i32) -> (i32, i32, i32) {
    %c0_i32 = arith.constant 0 : i32
    %c0_i32_0 = arith.constant 0 : i32
    %c0_i32_1 = arith.constant 0 : i32
    %c0_i32_2 = arith.constant 0 : i32
    return %c0_i32, %c0_i32_0, %c0_i32_1 : i32, i32, i32
  }
  func.func @transform_4(%arg0: i32) -> (i32, i32) {
    %c0_i32 = arith.constant 0 : i32
    %c0_i32_0 = arith.constant 0 : i32
    %c0_i32_1 = arith.constant 0 : i32
    return %c0_i32, %c0_i32_0 : i32, i32
  }
  func.func @transform_5(%arg0: i32) -> (i32, i32) {
    %c0_i32 = arith.constant 0 : i32
    %c0_i32_0 = arith.constant 0 : i32
    %c0_i32_1 = arith.constant 0 : i32
    return %c0_i32, %c0_i32_0 : i32, i32
  }
  func.func @transform_6(%arg0: i32) -> (i32, i32) {
    %c0_i32 = arith.constant 0 : i32
    %c0_i32_0 = arith.constant 0 : i32
    %c0_i32_1 = arith.constant 0 : i32
    return %c0_i32, %c0_i32_0 : i32, i32
  }
  func.func @transform_7(%arg0: i32) -> (i32, i32, i32) {
    %c0_i32 = arith.constant 0 : i32
    %c0_i32_0 = arith.constant 0 : i32
    %c0_i32_1 = arith.constant 0 : i32
    %c0_i32_2 = arith.constant 0 : i32
    return %c0_i32, %c0_i32_0, %c0_i32_1 : i32, i32, i32
  }
  func.func @transform_8(%arg0: i32) -> (i32, i32) {
    %c0_i32 = arith.constant 0 : i32
    %c0_i32_0 = arith.constant 0 : i32
    %c0_i32_1 = arith.constant 0 : i32
    return %c0_i32, %c0_i32_0 : i32, i32
  }
  func.func @transform_9(%arg0: i32) -> (i32, i32) {
    %c0_i32 = arith.constant 0 : i32
    %c0_i32_0 = arith.constant 0 : i32
    %c0_i32_1 = arith.constant 0 : i32
    return %c0_i32, %c0_i32_0 : i32, i32
  }
  func.func @transform_10(%arg0: i32) -> (i32, i32) {
    %c0_i32 = arith.constant 0 : i32
    %c0_i32_0 = arith.constant 0 : i32
    %c0_i32_1 = arith.constant 0 : i32
    return %c0_i32, %c0_i32_0 : i32, i32
  }
  func.func @transform_11(%arg0: i32) -> (i32, i32) {
    %c0_i32 = arith.constant 0 : i32
    %c0_i32_0 = arith.constant 0 : i32
    %c0_i32_1 = arith.constant 0 : i32
    return %c0_i32, %c0_i32_0 : i32, i32
  }
  func.func @transform_12(%arg0: i32) -> (i32, i32) {
    %c0_i32 = arith.constant 0 : i32
    %c0_i32_0 = arith.constant 0 : i32
    %c0_i32_1 = arith.constant 0 : i32
    return %c0_i32, %c0_i32_0 : i32, i32
  }
  func.func @transform_13(%arg0: i32) -> (i32, i32) {
    %c0_i32 = arith.constant 0 : i32
    %c0_i32_0 = arith.constant 0 : i32
    %c0_i32_1 = arith.constant 0 : i32
    return %c0_i32, %c0_i32_0 : i32, i32
  }
  func.func @transform_14(%arg0: i32) -> (i32, i32, i32) {
    %c0_i32 = arith.constant 0 : i32
    %c0_i32_0 = arith.constant 0 : i32
    %c0_i32_1 = arith.constant 0 : i32
    return %arg0, %c0_i32, %c0_i32_0 : i32, i32, i32
  }
}

</mosaic_0001>

<llo_original>
// kernel: casual_attention_block.1
$region0: #{casual_attention_block.1}
  #allocation0 [shape = 'u32[]', space=smem, size = 0x4, offset = 0x4, fixed_abs, tag = 'smem constant byte address 0x4 - core index']
  #allocation1 [shape = 'u32[72,128]{1,0:T(1,128)}', space=vmem, size = 0x9000, scoped, tag = 'internal scratch']
  %s0 = inlined_call_operand.vmem [shape: f32[2,8,32], index: 0, kind: input, shape index: {}]
  %s1 = inlined_call_operand.vmem [shape: f32[2,4,8,8], index: 1, kind: input, shape index: {}]
  %s2 = inlined_call_operand.vmem [shape: f32[4,1,8], index: 2, kind: input, shape index: {}]
  %s3 = inlined_call_operand.vmem [shape: f32[4,1,8], index: 3, kind: input, shape index: {}]
  %s4 = inlined_call_operand.vmem [shape: bf16[8,8], index: 4, kind: input, shape index: {}]
  %s5 = inlined_call_operand.vmem [shape: bf16[8,8], index: 5, kind: input, shape index: {}]
  %s6 = inlined_call_operand.vmem [shape: bf16[8,8], index: 6, kind: input, shape index: {}]
  %s7 = inlined_call_operand.vmem [shape: bf16[4,8,32], index: 7, kind: input, shape index: {}]
  %s8 = inlined_call_operand.vmem [shape: f32[1,32], index: 8, kind: input, shape index: {}]
  %s9 = inlined_call_operand.vmem [shape: f32[1,32], index: 9, kind: input, shape index: {}]
  %s10 = inlined_call_operand.vmem [shape: bf16[32,128], index: 10, kind: input, shape index: {}]
  %s11 = inlined_call_operand.vmem [shape: f32[1,128], index: 11, kind: input, shape index: {}]
  %s12 = inlined_call_operand.vmem [shape: bf16[128,32], index: 12, kind: input, shape index: {}]
  %s13 = inlined_call_operand.vmem [shape: f32[1,32], index: 13, kind: input, shape index: {}]
  %s14 = inlined_call_operand.hbm [shape: f32[2,8,32], index: 14, kind: output, shape index: {}]
  %s15 = sld [smem:[#allocation0]]
  $region89: #{casual_attention_block.1} parent=0
    _
  %s17 = ssub.s32 1, %s15
  %s18 = scalar_select 0, %s17, %s15
  $region1: #{casual_attention_block.1} parent=0
    #allocation2 [shape = 'u8[8192]{0}', space=vmem, size = 0x2000, scoped, tag = 'output window, operand 0']
    #allocation3 [shape = 's32[2]{0}', space=sflag, size = 0x8, scoped, tag = 'scoped memory for casual_attention_block.1']
    %19 = vsyncpa [#allocation3], 0
    %s20 = scalar_lea.sflag [#allocation3], 1
    %21 = vsyncpa %s20, 0
    loop: start=0, step=1, limit=4
    $region2: #{casual_attention_block.1} parent=1 // loop_pre_header
      _
    $region3: #{casual_attention_block.1} parent=1 // loop_header
      %s23 = sphi 0, %s27
      %p24 = scmp.ge.s32.totalorder %s23, 4
      %s33 = sphi 0, %s35
      %s36 = sphi 0, %s33
      %s37 = sphi 0, %s36
      %s53 = sphi 0, %s37
      %s59 = sphi 0, %s61
      %s62 = sphi 0, %s59
      %s63 = sphi 0, %s62
      %s79 = sphi 0, %s63
      %s83 = sphi 0, %s83
      %s85 = sphi 0, %s83
      %s86 = sphi 0, %s85
      %s100 = sphi 0, %s86
      %s104 = sphi 0, %s104
      %s106 = sphi 0, %s104
      %s107 = sphi 0, %s106
      %s121 = sphi 0, %s107
      %s125 = sphi 0, %s125
      %s127 = sphi 0, %s125
      %s128 = sphi 0, %s127
      %s142 = sphi 0, %s128
      %s146 = sphi 0, %s146
      %s148 = sphi 0, %s146
      %s149 = sphi 0, %s148
      %s163 = sphi 0, %s149
      %s167 = sphi 0, %s167
      %s169 = sphi 0, %s167
      %s170 = sphi 0, %s169
      %s184 = sphi 0, %s170
      %s188 = sphi 0, %s188
      %s190 = sphi 0, %s188
      %s191 = sphi 0, %s190
      %s205 = sphi 0, %s191
      %s209 = sphi 0, %s209
      %s211 = sphi 0, %s209
      %s212 = sphi 0, %s211
      %s226 = sphi 0, %s212
      %s230 = sphi 0, %s230
      %s232 = sphi 0, %s230
      %s233 = sphi 0, %s232
      %s247 = sphi 0, %s233
      %s251 = sphi 0, %s251
      %s253 = sphi 0, %s251
      %s254 = sphi 0, %s253
      %s268 = sphi 0, %s254
      %s272 = sphi 0, %s272
      %s274 = sphi 0, %s272
      %s275 = sphi 0, %s274
      %s289 = sphi 0, %s275
      %s293 = sphi 0, %s293
      %s295 = sphi 0, %s293
      %s296 = sphi 0, %s295
      %s310 = sphi 0, %s296
      %s314 = sphi 0, %s314
      %s316 = sphi 0, %s314
      %s317 = sphi 0, %s316
      %s331 = sphi 0, %s317
      %s337 = sphi 0, %s339
      %s340 = sphi 0, %s337
      %s341 = sphi 0, %s340
      %s357 = sphi 0, %s341
    $region4: #{casual_attention_block.1} parent=1 // loop_header_branch
      %26 = sbr.rel (%p24) target = $region8
    $region5: #{casual_attention_block.1} parent=1 // loop_body
      %s28 = ssub.s32 %s23, 1
      %s29 = ssub.s32 %s23, 2
      %s30 = sadd.s32 %s23, 1
      %s31 = ssub.s32 %s23, %s30
      %p32 = scmp.eq.s32.totalorder %s31, 0
      %s34 = sadd.s32 %s33, 1
      %s35 = scalar_select %p32, %s33, %s34
      %p38 = pneg %p32
      %p39 = scmp.eq.s32.totalorder %s23, 1
      %p40 = por %p38, %p39
      %p41 = scmp.ne.s32.totalorder %s33, %s36
      %p42 = scmp.eq.s32.totalorder %s23, 0
      %p43 = por %p41, %p42
      %p44 = scmp.ne.s32.totalorder %s33, %s36
      %p45 = scmp.eq.s32.totalorder %s28, 1
      %p46 = por %p44, %p45
      %p47 = scmp.ne.s32.totalorder %s36, %s37
      %p48 = scmp.eq.s32.totalorder %s28, 0
      %p49 = por %p47, %p48
      %p50 = scmp.ne.s32.totalorder %s36, %s37
      %p51 = scmp.eq.s32.totalorder %s29, 1
      %p52 = por %p50, %p51
      %p54 = scmp.ne.s32.totalorder %s37, %s53
      %p55 = scmp.eq.s32.totalorder %s29, 0
      %p56 = por %p54, %p55
      %s57 = ssub.s32 %s23, %s30
      %p58 = scmp.eq.s32.totalorder %s57, 0
      %s60 = sadd.s32 %s59, 1
      %s61 = scalar_select %p58, %s59, %s60
      %p64 = pneg %p58
      %p65 = scmp.eq.s32.totalorder %s23, 1
      %p66 = por %p64, %p65
      %p67 = scmp.ne.s32.totalorder %s59, %s62
      %p68 = scmp.eq.s32.totalorder %s23, 0
      %p69 = por %p67, %p68
      %p70 = scmp.ne.s32.totalorder %s59, %s62
      %p71 = scmp.eq.s32.totalorder %s28, 1
      %p72 = por %p70, %p71
      %p73 = scmp.ne.s32.totalorder %s62, %s63
      %p74 = scmp.eq.s32.totalorder %s28, 0
      %p75 = por %p73, %p74
      %p76 = scmp.ne.s32.totalorder %s62, %s63
      %p77 = scmp.eq.s32.totalorder %s29, 1
      %p78 = por %p76, %p77
      %p80 = scmp.ne.s32.totalorder %s63, %s79
      %p81 = scmp.eq.s32.totalorder %s29, 0
      %p82 = por %p80, %p81
      %s84 = sadd.s32 %s83, 1
      %p87 = scmp.eq.s32.totalorder %s23, 1
      %p88 = scmp.ne.s32.totalorder %s83, %s85
      %p89 = scmp.eq.s32.totalorder %s23, 0
      %p90 = por %p88, %p89
      %p91 = scmp.ne.s32.totalorder %s83, %s85
      %p92 = scmp.eq.s32.totalorder %s28, 1
      %p93 = por %p91, %p92
      %p94 = scmp.ne.s32.totalorder %s85, %s86
      %p95 = scmp.eq.s32.totalorder %s28, 0
      %p96 = por %p94, %p95
      %p97 = scmp.ne.s32.totalorder %s85, %s86
      %p98 = scmp.eq.s32.totalorder %s29, 1
      %p99 = por %p97, %p98
      %p101 = scmp.ne.s32.totalorder %s86, %s100
      %p102 = scmp.eq.s32.totalorder %s29, 0
      %p103 = por %p101, %p102
      %s105 = sadd.s32 %s104, 1
      %p108 = scmp.eq.s32.totalorder %s23, 1
      %p109 = scmp.ne.s32.totalorder %s104, %s106
      %p110 = scmp.eq.s32.totalorder %s23, 0
      %p111 = por %p109, %p110
      %p112 = scmp.ne.s32.totalorder %s104, %s106
      %p113 = scmp.eq.s32.totalorder %s28, 1
      %p114 = por %p112, %p113
      %p115 = scmp.ne.s32.totalorder %s106, %s107
      %p116 = scmp.eq.s32.totalorder %s28, 0
      %p117 = por %p115, %p116
      %p118 = scmp.ne.s32.totalorder %s106, %s107
      %p119 = scmp.eq.s32.totalorder %s29, 1
      %p120 = por %p118, %p119
      %p122 = scmp.ne.s32.totalorder %s107, %s121
      %p123 = scmp.eq.s32.totalorder %s29, 0
      %p124 = por %p122, %p123
      %s126 = sadd.s32 %s125, 1
      %p129 = scmp.eq.s32.totalorder %s23, 1
      %p130 = scmp.ne.s32.totalorder %s125, %s127
      %p131 = scmp.eq.s32.totalorder %s23, 0
      %p132 = por %p130, %p131
      %p133 = scmp.ne.s32.totalorder %s125, %s127
      %p134 = scmp.eq.s32.totalorder %s28, 1
      %p135 = por %p133, %p134
      %p136 = scmp.ne.s32.totalorder %s127, %s128
      %p137 = scmp.eq.s32.totalorder %s28, 0
      %p138 = por %p136, %p137
      %p139 = scmp.ne.s32.totalorder %s127, %s128
      %p140 = scmp.eq.s32.totalorder %s29, 1
      %p141 = por %p139, %p140
      %p143 = scmp.ne.s32.totalorder %s128, %s142
      %p144 = scmp.eq.s32.totalorder %s29, 0
      %p145 = por %p143, %p144
      %s147 = sadd.s32 %s146, 1
      %p150 = scmp.eq.s32.totalorder %s23, 1
      %p151 = scmp.ne.s32.totalorder %s146, %s148
      %p152 = scmp.eq.s32.totalorder %s23, 0
      %p153 = por %p151, %p152
      %p154 = scmp.ne.s32.totalorder %s146, %s148
      %p155 = scmp.eq.s32.totalorder %s28, 1
      %p156 = por %p154, %p155
      %p157 = scmp.ne.s32.totalorder %s148, %s149
      %p158 = scmp.eq.s32.totalorder %s28, 0
      %p159 = por %p157, %p158
      %p160 = scmp.ne.s32.totalorder %s148, %s149
      %p161 = scmp.eq.s32.totalorder %s29, 1
      %p162 = por %p160, %p161
      %p164 = scmp.ne.s32.totalorder %s149, %s163
      %p165 = scmp.eq.s32.totalorder %s29, 0
      %p166 = por %p164, %p165
      %s168 = sadd.s32 %s167, 1
      %p171 = scmp.eq.s32.totalorder %s23, 1
      %p172 = scmp.ne.s32.totalorder %s167, %s169
      %p173 = scmp.eq.s32.totalorder %s23, 0
      %p174 = por %p172, %p173
      %p175 = scmp.ne.s32.totalorder %s167, %s169
      %p176 = scmp.eq.s32.totalorder %s28, 1
      %p177 = por %p175, %p176
      %p178 = scmp.ne.s32.totalorder %s169, %s170
      %p179 = scmp.eq.s32.totalorder %s28, 0
      %p180 = por %p178, %p179
      %p181 = scmp.ne.s32.totalorder %s169, %s170
      %p182 = scmp.eq.s32.totalorder %s29, 1
      %p183 = por %p181, %p182
      %p185 = scmp.ne.s32.totalorder %s170, %s184
      %p186 = scmp.eq.s32.totalorder %s29, 0
      %p187 = por %p185, %p186
      %s189 = sadd.s32 %s188, 1
      %p192 = scmp.eq.s32.totalorder %s23, 1
      %p193 = scmp.ne.s32.totalorder %s188, %s190
      %p194 = scmp.eq.s32.totalorder %s23, 0
      %p195 = por %p193, %p194
      %p196 = scmp.ne.s32.totalorder %s188, %s190
      %p197 = scmp.eq.s32.totalorder %s28, 1
      %p198 = por %p196, %p197
      %p199 = scmp.ne.s32.totalorder %s190, %s191
      %p200 = scmp.eq.s32.totalorder %s28, 0
      %p201 = por %p199, %p200
      %p202 = scmp.ne.s32.totalorder %s190, %s191
      %p203 = scmp.eq.s32.totalorder %s29, 1
      %p204 = por %p202, %p203
      %p206 = scmp.ne.s32.totalorder %s191, %s205
      %p207 = scmp.eq.s32.totalorder %s29, 0
      %p208 = por %p206, %p207
      %s210 = sadd.s32 %s209, 1
      %p213 = scmp.eq.s32.totalorder %s23, 1
      %p214 = scmp.ne.s32.totalorder %s209, %s211
      %p215 = scmp.eq.s32.totalorder %s23, 0
      %p216 = por %p214, %p215
      %p217 = scmp.ne.s32.totalorder %s209, %s211
      %p218 = scmp.eq.s32.totalorder %s28, 1
      %p219 = por %p217, %p218
      %p220 = scmp.ne.s32.totalorder %s211, %s212
      %p221 = scmp.eq.s32.totalorder %s28, 0
      %p222 = por %p220, %p221
      %p223 = scmp.ne.s32.totalorder %s211, %s212
      %p224 = scmp.eq.s32.totalorder %s29, 1
      %p225 = por %p223, %p224
      %p227 = scmp.ne.s32.totalorder %s212, %s226
      %p228 = scmp.eq.s32.totalorder %s29, 0
      %p229 = por %p227, %p228
      %s231 = sadd.s32 %s230, 1
      %p234 = scmp.eq.s32.totalorder %s23, 1
      %p235 = scmp.ne.s32.totalorder %s230, %s232
      %p236 = scmp.eq.s32.totalorder %s23, 0
      %p237 = por %p235, %p236
      %p238 = scmp.ne.s32.totalorder %s230, %s232
      %p239 = scmp.eq.s32.totalorder %s28, 1
      %p240 = por %p238, %p239
      %p241 = scmp.ne.s32.totalorder %s232, %s233
      %p242 = scmp.eq.s32.totalorder %s28, 0
      %p243 = por %p241, %p242
      %p244 = scmp.ne.s32.totalorder %s232, %s233
      %p245 = scmp.eq.s32.totalorder %s29, 1
      %p246 = por %p244, %p245
      %p248 = scmp.ne.s32.totalorder %s233, %s247
      %p249 = scmp.eq.s32.totalorder %s29, 0
      %p250 = por %p248, %p249
      %s252 = sadd.s32 %s251, 1
      %p255 = scmp.eq.s32.totalorder %s23, 1
      %p256 = scmp.ne.s32.totalorder %s251, %s253
      %p257 = scmp.eq.s32.totalorder %s23, 0
      %p258 = por %p256, %p257
      %p259 = scmp.ne.s32.totalorder %s251, %s253
      %p260 = scmp.eq.s32.totalorder %s28, 1
      %p261 = por %p259, %p260
      %p262 = scmp.ne.s32.totalorder %s253, %s254
      %p263 = scmp.eq.s32.totalorder %s28, 0
      %p264 = por %p262, %p263
      %p265 = scmp.ne.s32.totalorder %s253, %s254
      %p266 = scmp.eq.s32.totalorder %s29, 1
      %p267 = por %p265, %p266
      %p269 = scmp.ne.s32.totalorder %s254, %s268
      %p270 = scmp.eq.s32.totalorder %s29, 0
      %p271 = por %p269, %p270
      %s273 = sadd.s32 %s272, 1
      %p276 = scmp.eq.s32.totalorder %s23, 1
      %p277 = scmp.ne.s32.totalorder %s272, %s274
      %p278 = scmp.eq.s32.totalorder %s23, 0
      %p279 = por %p277, %p278
      %p280 = scmp.ne.s32.totalorder %s272, %s274
      %p281 = scmp.eq.s32.totalorder %s28, 1
      %p282 = por %p280, %p281
      %p283 = scmp.ne.s32.totalorder %s274, %s275
      %p284 = scmp.eq.s32.totalorder %s28, 0
      %p285 = por %p283, %p284
      %p286 = scmp.ne.s32.totalorder %s274, %s275
      %p287 = scmp.eq.s32.totalorder %s29, 1
      %p288 = por %p286, %p287
      %p290 = scmp.ne.s32.totalorder %s275, %s289
      %p291 = scmp.eq.s32.totalorder %s29, 0
      %p292 = por %p290, %p291
      %s294 = sadd.s32 %s293, 1
      %p297 = scmp.eq.s32.totalorder %s23, 1
      %p298 = scmp.ne.s32.totalorder %s293, %s295
      %p299 = scmp.eq.s32.totalorder %s23, 0
      %p300 = por %p298, %p299
      %p301 = scmp.ne.s32.totalorder %s293, %s295
      %p302 = scmp.eq.s32.totalorder %s28, 1
      %p303 = por %p301, %p302
      %p304 = scmp.ne.s32.totalorder %s295, %s296
      %p305 = scmp.eq.s32.totalorder %s28, 0
      %p306 = por %p304, %p305
      %p307 = scmp.ne.s32.totalorder %s295, %s296
      %p308 = scmp.eq.s32.totalorder %s29, 1
      %p309 = por %p307, %p308
      %p311 = scmp.ne.s32.totalorder %s296, %s310
      %p312 = scmp.eq.s32.totalorder %s29, 0
      %p313 = por %p311, %p312
      %s315 = sadd.s32 %s314, 1
      %p318 = scmp.eq.s32.totalorder %s23, 1
      %p319 = scmp.ne.s32.totalorder %s314, %s316
      %p320 = scmp.eq.s32.totalorder %s23, 0
      %p321 = por %p319, %p320
      %p322 = scmp.ne.s32.totalorder %s314, %s316
      %p323 = scmp.eq.s32.totalorder %s28, 1
      %p324 = por %p322, %p323
      %p325 = scmp.ne.s32.totalorder %s316, %s317
      %p326 = scmp.eq.s32.totalorder %s28, 0
      %p327 = por %p325, %p326
      %p328 = scmp.ne.s32.totalorder %s316, %s317
      %p329 = scmp.eq.s32.totalorder %s29, 1
      %p330 = por %p328, %p329
      %p332 = scmp.ne.s32.totalorder %s317, %s331
      %p333 = scmp.eq.s32.totalorder %s29, 0
      %p334 = por %p332, %p333
      %s335 = ssub.s32 %s23, %s30
      %p336 = scmp.eq.s32.totalorder %s335, 0
      %s338 = sadd.s32 %s337, 1
      %s339 = scalar_select %p336, %s337, %s338
      %p342 = pneg %p336
      %p343 = scmp.eq.s32.totalorder %s23, 1
      %p344 = por %p342, %p343
      %p345 = scmp.ne.s32.totalorder %s337, %s340
      %p346 = scmp.eq.s32.totalorder %s23, 0
      %p347 = por %p345, %p346
      %p348 = scmp.ne.s32.totalorder %s337, %s340
      %p349 = scmp.eq.s32.totalorder %s28, 1
      %p350 = por %p348, %p349
      %p351 = scmp.ne.s32.totalorder %s340, %s341
      %p352 = scmp.eq.s32.totalorder %s28, 0
      %p353 = por %p351, %p352
      %p354 = scmp.ne.s32.totalorder %s340, %s341
      %p355 = scmp.eq.s32.totalorder %s29, 1
      %p356 = por %p354, %p355
      %p358 = scmp.ne.s32.totalorder %s341, %s357
      %p359 = scmp.eq.s32.totalorder %s29, 0
      %p360 = por %p358, %p359
      %p361 = scmp.le.s32.totalorder 1, %s23
      %p362 = scmp.lt.s32.totalorder %s23, 3
      %p363 = pnand %p361, %p362
      %p364 = pneg %p363
      // Predicated region
      $region9: #{casual_attention_block.1} parent=5 // pred_check
        _
      $region10: #{casual_attention_block.1} parent=5 // pred_check_branch
        %366 = sbr.rel (%p363) target = $region12
      $region11: #{casual_attention_block.1} parent=5 // pred_region
        %s367 = ssub.s32 %s23, 1
        // Predicated region
        $region13: #{casual_attention_block.1} parent=11 // pred_check
          %p368 = pneg %p96
        $region14: #{casual_attention_block.1} parent=11 // pred_check_branch
          %370 = sbr.rel (%p368) target = $region16
        $region15: #{casual_attention_block.1} parent=11 // pred_region
          _
        $region16: #{casual_attention_block.1} parent=11 // pred_fallthru
          _
        // Predicated region
        $region17: #{casual_attention_block.1} parent=11 // pred_check
          %p371 = pneg %p117
        $region18: #{casual_attention_block.1} parent=11 // pred_check_branch
          %373 = sbr.rel (%p371) target = $region20
        $region19: #{casual_attention_block.1} parent=11 // pred_region
          _
        $region20: #{casual_attention_block.1} parent=11 // pred_fallthru
          _
        // Predicated region
        $region21: #{casual_attention_block.1} parent=11 // pred_check
          %p374 = pneg %p138
        $region22: #{casual_attention_block.1} parent=11 // pred_check_branch
          %376 = sbr.rel (%p374) target = $region24
        $region23: #{casual_attention_block.1} parent=11 // pred_region
          _
        $region24: #{casual_attention_block.1} parent=11 // pred_fallthru
          _
        // Predicated region
        $region25: #{casual_attention_block.1} parent=11 // pred_check
          %p377 = pneg %p159
        $region26: #{casual_attention_block.1} parent=11 // pred_check_branch
          %379 = sbr.rel (%p377) target = $region28
        $region27: #{casual_attention_block.1} parent=11 // pred_region
          _
        $region28: #{casual_attention_block.1} parent=11 // pred_fallthru
          _
        // Predicated region
        $region29: #{casual_attention_block.1} parent=11 // pred_check
          %p380 = pneg %p180
        $region30: #{casual_attention_block.1} parent=11 // pred_check_branch
          %382 = sbr.rel (%p380) target = $region32
        $region31: #{casual_attention_block.1} parent=11 // pred_region
          _
        $region32: #{casual_attention_block.1} parent=11 // pred_fallthru
          _
        // Predicated region
        $region33: #{casual_attention_block.1} parent=11 // pred_check
          %p383 = pneg %p201
        $region34: #{casual_attention_block.1} parent=11 // pred_check_branch
          %385 = sbr.rel (%p383) target = $region36
        $region35: #{casual_attention_block.1} parent=11 // pred_region
          _
        $region36: #{casual_attention_block.1} parent=11 // pred_fallthru
          _
        // Predicated region
        $region37: #{casual_attention_block.1} parent=11 // pred_check
          %p386 = pneg %p222
        $region38: #{casual_attention_block.1} parent=11 // pred_check_branch
          %388 = sbr.rel (%p386) target = $region40
        $region39: #{casual_attention_block.1} parent=11 // pred_region
          _
        $region40: #{casual_attention_block.1} parent=11 // pred_fallthru
          _
        // Predicated region
        $region41: #{casual_attention_block.1} parent=11 // pred_check
          %p389 = pneg %p243
        $region42: #{casual_attention_block.1} parent=11 // pred_check_branch
          %391 = sbr.rel (%p389) target = $region44
        $region43: #{casual_attention_block.1} parent=11 // pred_region
          _
        $region44: #{casual_attention_block.1} parent=11 // pred_fallthru
          _
        // Predicated region
        $region45: #{casual_attention_block.1} parent=11 // pred_check
          %p392 = pneg %p264
        $region46: #{casual_attention_block.1} parent=11 // pred_check_branch
          %394 = sbr.rel (%p392) target = $region48
        $region47: #{casual_attention_block.1} parent=11 // pred_region
          _
        $region48: #{casual_attention_block.1} parent=11 // pred_fallthru
          _
        // Predicated region
        $region49: #{casual_attention_block.1} parent=11 // pred_check
          %p395 = pneg %p285
        $region50: #{casual_attention_block.1} parent=11 // pred_check_branch
          %397 = sbr.rel (%p395) target = $region52
        $region51: #{casual_attention_block.1} parent=11 // pred_region
          _
        $region52: #{casual_attention_block.1} parent=11 // pred_fallthru
          _
        // Predicated region
        $region53: #{casual_attention_block.1} parent=11 // pred_check
          %p398 = pneg %p306
        $region54: #{casual_attention_block.1} parent=11 // pred_check_branch
          %400 = sbr.rel (%p398) target = $region56
        $region55: #{casual_attention_block.1} parent=11 // pred_region
          _
        $region56: #{casual_attention_block.1} parent=11 // pred_fallthru
          _
        // Predicated region
        $region57: #{casual_attention_block.1} parent=11 // pred_check
          %p401 = pneg %p327
        $region58: #{casual_attention_block.1} parent=11 // pred_check_branch
          %403 = sbr.rel (%p401) target = $region60
        $region59: #{casual_attention_block.1} parent=11 // pred_region
          _
        $region60: #{casual_attention_block.1} parent=11 // pred_fallthru
          _
      $region12: #{casual_attention_block.1} parent=5 // pred_fallthru
        _
      %p404 = scmp.lt.s32.totalorder %s23, 2
      // Predicated region
      $region61: #{casual_attention_block.1} parent=5 // pred_check
        %p405 = pneg %p404
      $region62: #{casual_attention_block.1} parent=5 // pred_check_branch
        %407 = sbr.rel (%p405) target = $region64
      $region63: #{casual_attention_block.1} parent=5 // pred_region
        // Predicated region
        $region65: #{casual_attention_block.1} parent=63 // pred_check
          %p408 = pneg %p43
        $region66: #{casual_attention_block.1} parent=63 // pred_check_branch
          %410 = sbr.rel (%p408) target = $region68
        $region67: #{casual_attention_block.1} parent=63 // pred_region
          %p411 = scmp.lt.s32.totalorder %s23, 1
          %s412 = scalar_select %p411, %s23, 1
          %s413 = smul.addr %s412, 8
          %s414 = scalar_lea.vmem %s0, %s413
        $region68: #{casual_attention_block.1} parent=63 // pred_fallthru
          _
        // Predicated region
        $region69: #{casual_attention_block.1} parent=63 // pred_check
          %p415 = pneg %p69
        $region70: #{casual_attention_block.1} parent=63 // pred_check_branch
          %417 = sbr.rel (%p415) target = $region72
        $region71: #{casual_attention_block.1} parent=63 // pred_region
          %p418 = scmp.lt.s32.totalorder %s23, 1
          %s419 = scalar_select %p418, %s23, 1
          %s420 = smul.addr %s419, 4
          %s421 = smul.addr %s420, 8
          %s422 = scalar_lea.vmem %s1, %s421
        $region72: #{casual_attention_block.1} parent=63 // pred_fallthru
          _
      $region64: #{casual_attention_block.1} parent=5 // pred_fallthru
        _
      %p423 = scmp.le.s32.totalorder 1, %s23
      %p424 = scmp.lt.s32.totalorder %s23, 3
      %p425 = pnand %p423, %p424
      %p426 = pneg %p425
      // Predicated region
      $region73: #{casual_attention_block.1} parent=5 // pred_check
        _
      $region74: #{casual_attention_block.1} parent=5 // pred_check_branch
        %428 = sbr.rel (%p425) target = $region76
      $region75: #{casual_attention_block.1} parent=5 // pred_region
        %s429 = ssub.s32 %s23, 1
        %p430 = scmp.lt.s32.totalorder %s28, 1
        %s431 = scalar_select %p430, %s28, 1
        %s432 = smul.addr %s431, 8
        %s433 = scalar_lea.vmem %s0, %s432
        %p434 = pneg %p49
        %p435 = pneg %p46
        %p436 = scmp.lt.s32.totalorder %s28, 1
        %s437 = scalar_select %p436, %s28, 1
        %s438 = smul.addr %s437, 4
        %s439 = smul.addr %s438, 8
        %s440 = scalar_lea.vmem %s1, %s439
        %p441 = pneg %p75
        %p442 = pneg %p72
        %p443 = pneg %p96
        %p444 = pneg %p93
        %p445 = pneg %p117
        %p446 = pneg %p114
        %p447 = pneg %p138
        %p448 = pneg %p135
        %p449 = pneg %p159
        %p450 = pneg %p156
        %p451 = pneg %p180
        %p452 = pneg %p177
        %p453 = pneg %p201
        %p454 = pneg %p198
        %p455 = pneg %p222
        %p456 = pneg %p219
        %p457 = pneg %p243
        %p458 = pneg %p240
        %p459 = pneg %p264
        %p460 = pneg %p261
        %p461 = pneg %p285
        %p462 = pneg %p282
        %p463 = pneg %p306
        %p464 = pneg %p303
        %p465 = pneg %p327
        %p466 = pneg %p324
        %p467 = pneg %p353
        %p468 = pneg %p350
        %s469 = sand.u32 %s340, 1
        %s470 = scalar_lea.sflag [#allocation3], %s469
        %s471 = sand.u32 %s340, 1
        %s472 = smul.addr %s471, 8
        %s473 = scalar_lea.vmem [#allocation2], %s472
        %p474 = scmp.lt.s32.totalorder %s28, 1
        %s475 = scalar_select %p474, %s28, 1
        %s476 = smul.addr %s475, 8
        %s477 = scalar_lea.vmem %s0, %s476
        %p478 = scmp.lt.s32.totalorder %s28, 1
        %s479 = scalar_select %p478, %s28, 1
        %s480 = smul.addr %s479, 4
        %s481 = smul.addr %s480, 8
        %s482 = scalar_lea.vmem %s1, %s481
        %v484 = vld [vmem:[%s477] sm:$0xff]
        %v485 = vld [vmem:[%s482] sm:$0xff]
        %v486 = vld [vmem:[%s482 + $0x8] sm:$0xff]
        %v487 = vld [vmem:[%s482 + $0x10] sm:$0xff]
        %v488 = vld [vmem:[%s482 + $0x18] sm:$0xff]
        %vm489 = vcmask 261120
        %v490 = vsel %vm489, %v484, 0.0
        %491 = vadd.xlane.f32.xlu0 %v490
        %v492 = vpop.xlane.xlu0 %491
        %v493 = vrcp.pop 32.0
        %v494 = vmul.f32 32.0, %v493
        %v495 = vsub.f32 1.0, %v494
        %v496 = vmul.f32 %v493, %v495
        %v497 = vadd.f32 %v493, %v496
        %vm498 = vweird.f32 %v493
        %v499 = vsel %vm498, %v493, %v497
        %v500 = vmul.f32 %v492, %v499
        %v501 = vsub.f32 %v484, %v500
        %v502 = vmul.f32 %v501, %v501
        %v503 = vsel %vm489, %v502, 0.0
        %504 = vadd.xlane.f32.xlu0 %v503
        %v505 = vpop.xlane.xlu0 %504
        %v506 = vmul.f32 %v505, %v499
        %v507 = vadd.f32 %v506, 1e-05
        %v508 = vrsqrt.pop %v507
        %v509 = vmul.f32 %v508, %v507
        %v510 = vmul.f32 %v509, %v508
        %v511 = vmul.f32 0.5, %v510
        %v512 = vsub.f32 1.5, %v511
        %v513 = vmul.f32 %v508, %v512
        %vm514 = vweird.f32 %v507
        %vm515 = vweird.f32 %v508
        %vm516 = vmor %vm514, %vm515
        %v517 = vsel %vm516, %v508, %v513
        %v518 = vsub.f32 %v485, %v500
        %v519 = vsub.f32 %v486, %v500
        %v520 = vsub.f32 %v487, %v500
        %v521 = vsub.f32 %v488, %v500
        %v522 = vmul.f32 %v518, %v517
        %v523 = vmul.f32 %v519, %v517
        %v524 = vmul.f32 %v520, %v517
        %v525 = vmul.f32 %v521, %v517
        %v526 = vld [vmem:[%s2] sm:$0x1]
        %v527 = vld [vmem:[%s2 + $0x1] sm:$0x1]
        %v528 = vld [vmem:[%s2 + $0x2] sm:$0x1]
        %v529 = vld [vmem:[%s2 + $0x3] sm:$0x1]
        %v534 = vperm.slane %v526, 0
        %v535 = vperm.slane %v527, 0
        %v536 = vperm.slane %v528, 0
        %v537 = vperm.slane %v529, 0
        %v542 = vmul.f32 %v522, %v534
        %v543 = vmul.f32 %v523, %v535
        %v544 = vmul.f32 %v524, %v536
        %v545 = vmul.f32 %v525, %v537
        %v546 = vld [vmem:[%s3] sm:$0x1]
        %v547 = vld [vmem:[%s3 + $0x1] sm:$0x1]
        %v548 = vld [vmem:[%s3 + $0x2] sm:$0x1]
        %v549 = vld [vmem:[%s3 + $0x3] sm:$0x1]
        %v554 = vperm.slane %v546, 0
        %v555 = vperm.slane %v547, 0
        %v556 = vperm.slane %v548, 0
        %v557 = vperm.slane %v549, 0
        %v562 = vadd.f32 %v542, %v554
        %v563 = vadd.f32 %v543, %v555
        %v564 = vadd.f32 %v544, %v556
        %v565 = vadd.f32 %v545, %v557
        %v566 = vpack.c.bf16 %v563, %v562
        %v567 = vpack.c.bf16 %v565, %v564
        %v568 = vld [vmem:[%s4] sm:$0xf]
        %vm569 = vcmask 64512
        %v571 = vsel %vm569, %v566, 0
        %v574 = vsel %vm569, %v567, 0
        %vm576 = vcmask 1043456
        %v578 = vsel %vm576, %v568, 0
        %580 = vmatpush.bf16.msra.mxu0 0
        %581 = vmatpush.bf16.msra.mxu0 0
        %582 = vmatpush.bf16.msra.mxu0 0
        %583 = vmatpush.bf16.msra.mxu0 0
        %584 = vmatpush.bf16.msra.mxu0 0
        %585 = vmatpush.bf16.msra.mxu0 0
        %586 = vmatpush.bf16.msra.mxu0 0
        %587 = vmatpush.bf16.msra.mxu0 %v578
        %588 = vmatmul.bf16.gmra.mxu0 %v571
        %v589 = vpop.f32.mrf.mxu0
        %v590 = vadd.f32 0.0, %v589
        %v591 = vpop.f32.mrf.mxu0
        %v592 = vadd.f32 0.0, %v591
        %593 = vmatmul.bf16.gmra.mxu0 %v574
        %v594 = vpop.f32.mrf.mxu0
        %v595 = vadd.f32 0.0, %v594
        %v596 = vpop.f32.mrf.mxu0
        %v597 = vadd.f32 0.0, %v596
        %598 = vdwg.mxu0
        %v599 = vld [vmem:[%s5] sm:$0xf]
        %v601 = vsel %vm576, %v599, 0
        %603 = vmatpush.bf16.msra.mxu0 0
        %604 = vmatpush.bf16.msra.mxu0 0
        %605 = vmatpush.bf16.msra.mxu0 0
        %606 = vmatpush.bf16.msra.mxu0 0
        %607 = vmatpush.bf16.msra.mxu0 0
        %608 = vmatpush.bf16.msra.mxu0 0
        %609 = vmatpush.bf16.msra.mxu0 0
        %610 = vmatpush.bf16.msra.mxu0 %v601
        %611 = vmatmul.bf16.gmra.mxu0 %v571
        %v612 = vpop.f32.mrf.mxu0
        %v613 = vadd.f32 0.0, %v612
        %v614 = vpop.f32.mrf.mxu0
        %v615 = vadd.f32 0.0, %v614
        %616 = vmatmul.bf16.gmra.mxu0 %v574
        %v617 = vpop.f32.mrf.mxu0
        %v618 = vadd.f32 0.0, %v617
        %v619 = vpop.f32.mrf.mxu0
        %v620 = vadd.f32 0.0, %v619
        %621 = vdwg.mxu0
        %v622 = vld [vmem:[%s6] sm:$0xf]
        %v624 = vsel %vm576, %v622, 0
        %626 = vmatpush.bf16.msra.mxu0 0
        %627 = vmatpush.bf16.msra.mxu0 0
        %628 = vmatpush.bf16.msra.mxu0 0
        %629 = vmatpush.bf16.msra.mxu0 0
        %630 = vmatpush.bf16.msra.mxu0 0
        %631 = vmatpush.bf16.msra.mxu0 0
        %632 = vmatpush.bf16.msra.mxu0 0
        %633 = vmatpush.bf16.msra.mxu0 %v624
        %634 = vmatmul.bf16.gmra.mxu0 %v571
        %v635 = vpop.f32.mrf.mxu0
        %v636 = vadd.f32 0.0, %v635
        %v637 = vpop.f32.mrf.mxu0
        %v638 = vadd.f32 0.0, %v637
        %639 = vmatmul.bf16.gmra.mxu0 %v574
        %v640 = vpop.f32.mrf.mxu0
        %v641 = vadd.f32 0.0, %v640
        %v642 = vpop.f32.mrf.mxu0
        %v643 = vadd.f32 0.0, %v642
        %644 = vdwg.mxu0
        %v645 = vpack.c.bf16 %v590, %v590
        %v646 = vpack.c.bf16 %v592, %v592
        %v647 = vpack.c.bf16 %v595, %v595
        %v648 = vpack.c.bf16 %v597, %v597
        %v649 = vpack.c.bf16 %v613, %v613
        %v650 = vpack.c.bf16 %v615, %v615
        %v651 = vpack.c.bf16 %v618, %v618
        %v652 = vpack.c.bf16 %v620, %v620
        %v653 = vpack.c.bf16 %v636, %v636
        %v654 = vpack.c.bf16 %v638, %v638
        %v655 = vpack.c.bf16 %v641, %v641
        %v656 = vpack.c.bf16 %v643, %v643
        %v658 = vsel %vm569, %v645, 0
        %v661 = vsel %vm569, %v649, 0
        %663 = vmatpush.bf16.xpose.msra.mxu0 0
        %664 = vmatpush.bf16.xpose.msra.mxu0 0
        %665 = vmatpush.bf16.xpose.msra.mxu0 0
        %666 = vmatpush.bf16.xpose.msra.mxu0 0
        %667 = vmatpush.bf16.xpose.msra.mxu0 0
        %668 = vmatpush.bf16.xpose.msra.mxu0 0
        %669 = vmatpush.bf16.xpose.msra.mxu0 0
        %670 = vmatpush.bf16.xpose.msra.mxu0 %v661
        %671 = vmatmul.bf16.gmra.mxu0 %v658
        %v672 = vpop.f32.mrf.mxu0
        %v673 = vadd.f32 0.0, %v672
        %v674 = vpop.f32.mrf.mxu0
        %675 = vdwg.mxu0
        %v677 = vsel %vm569, %v646, 0
        %v680 = vsel %vm569, %v650, 0
        %682 = vmatpush.bf16.xpose.msra.mxu0 0
        %683 = vmatpush.bf16.xpose.msra.mxu0 0
        %684 = vmatpush.bf16.xpose.msra.mxu0 0
        %685 = vmatpush.bf16.xpose.msra.mxu0 0
        %686 = vmatpush.bf16.xpose.msra.mxu0 0
        %687 = vmatpush.bf16.xpose.msra.mxu0 0
        %688 = vmatpush.bf16.xpose.msra.mxu0 0
        %689 = vmatpush.bf16.xpose.msra.mxu0 %v680
        %690 = vmatmul.bf16.gmra.mxu0 %v677
        %v691 = vpop.f32.mrf.mxu0
        %v692 = vadd.f32 0.0, %v691
        %v693 = vpop.f32.mrf.mxu0
        %694 = vdwg.mxu0
        %v696 = vsel %vm569, %v647, 0
        %v699 = vsel %vm569, %v651, 0
        %701 = vmatpush.bf16.xpose.msra.mxu0 0
        %702 = vmatpush.bf16.xpose.msra.mxu0 0
        %703 = vmatpush.bf16.xpose.msra.mxu0 0
        %704 = vmatpush.bf16.xpose.msra.mxu0 0
        %705 = vmatpush.bf16.xpose.msra.mxu0 0
        %706 = vmatpush.bf16.xpose.msra.mxu0 0
        %707 = vmatpush.bf16.xpose.msra.mxu0 0
        %708 = vmatpush.bf16.xpose.msra.mxu0 %v699
        %709 = vmatmul.bf16.gmra.mxu0 %v696
        %v710 = vpop.f32.mrf.mxu0
        %v711 = vadd.f32 0.0, %v710
        %v712 = vpop.f32.mrf.mxu0
        %713 = vdwg.mxu0
        %v715 = vsel %vm569, %v648, 0
        %v718 = vsel %vm569, %v652, 0
        %720 = vmatpush.bf16.xpose.msra.mxu0 0
        %721 = vmatpush.bf16.xpose.msra.mxu0 0
        %722 = vmatpush.bf16.xpose.msra.mxu0 0
        %723 = vmatpush.bf16.xpose.msra.mxu0 0
        %724 = vmatpush.bf16.xpose.msra.mxu0 0
        %725 = vmatpush.bf16.xpose.msra.mxu0 0
        %726 = vmatpush.bf16.xpose.msra.mxu0 0
        %727 = vmatpush.bf16.xpose.msra.mxu0 %v718
        %728 = vmatmul.bf16.gmra.mxu0 %v715
        %v729 = vpop.f32.mrf.mxu0
        %v730 = vadd.f32 0.0, %v729
        %v731 = vpop.f32.mrf.mxu0
        %732 = vdwg.mxu0
        %v733 = vlaneseq
        %v734 = vshrl.u32 %v733, 7
        %v735 = vlaneseq
        %v736 = vand.u32 %v735, 127
        %vm737 = vcmp.ge.s32.totalorder %v734, %v736
        %v738 = vsel %vm737, 0.0, -1e+30
        %v739 = vmul.f32 %v673, 0.35355338
        %v740 = vmul.f32 %v692, 0.35355338
        %v741 = vmul.f32 %v711, 0.35355338
        %v742 = vmul.f32 %v730, 0.35355338
        %v743 = vadd.f32 %v739, %v738
        %v744 = vadd.f32 %v740, %v738
        %v745 = vadd.f32 %v741, %v738
        %v746 = vadd.f32 %v742, %v738
        %v747 = vsel %vm569, %v743, -inf
        %748 = vmax.xlane.f32.xlu0 %v747
        %v749 = vpop.xlane.xlu0 %748
        %v750 = vsel %vm569, %v744, -inf
        %751 = vmax.xlane.f32.xlu0 %v750
        %v752 = vpop.xlane.xlu0 %751
        %v753 = vsel %vm569, %v745, -inf
        %754 = vmax.xlane.f32.xlu0 %v753
        %v755 = vpop.xlane.xlu0 %754
        %v756 = vsel %vm569, %v746, -inf
        %757 = vmax.xlane.f32.xlu0 %v756
        %v758 = vpop.xlane.xlu0 %757
        %v759 = vsub.f32 %v743, %v749
        %v760 = vsub.f32 %v744, %v752
        %v761 = vsub.f32 %v745, %v755
        %v762 = vsub.f32 %v746, %v758
        %v763 = vmul.f32 %v759, 1.442695
        %v764 = vpow.pop %v763
        %v765 = vmul.f32 %v760, 1.442695
        %v766 = vpow.pop %v765
        %v767 = vmul.f32 %v761, 1.442695
        %v768 = vpow.pop %v767
        %v769 = vmul.f32 %v762, 1.442695
        %v770 = vpow.pop %v769
        %v771 = vsel %vm569, %v764, 0.0
        %772 = vadd.xlane.f32.xlu0 %v771
        %v773 = vpop.xlane.xlu0 %772
        %v774 = vsel %vm569, %v766, 0.0
        %775 = vadd.xlane.f32.xlu0 %v774
        %v776 = vpop.xlane.xlu0 %775
        %v777 = vsel %vm569, %v768, 0.0
        %778 = vadd.xlane.f32.xlu0 %v777
        %v779 = vpop.xlane.xlu0 %778
        %v780 = vsel %vm569, %v770, 0.0
        %781 = vadd.xlane.f32.xlu0 %v780
        %v782 = vpop.xlane.xlu0 %781
        %v783 = vrcp.pop %v773
        %v784 = vmul.f32 %v773, %v783
        %v785 = vsub.f32 1.0, %v784
        %v786 = vmul.f32 %v783, %v785
        %v787 = vadd.f32 %v783, %v786
        %vm788 = vweird.f32 %v773
        %vm789 = vweird.f32 %v783
        %vm790 = vmor %vm788, %vm789
        %v791 = vsel %vm790, %v783, %v787
        %v792 = vand.u32 2147483647, %v773
        %vm793 = vcmp.eq.f32.partialorder %v792, 8.507059e+37
        %v794 = vand.u32 %v773, 2147483648
        %v795 = vor.u32 1.1754944e-38, %v794
        %v796 = vsel %vm793, %v795, %v791
        %v797 = vrcp.pop %v776
        %v798 = vmul.f32 %v776, %v797
        %v799 = vsub.f32 1.0, %v798
        %v800 = vmul.f32 %v797, %v799
        %v801 = vadd.f32 %v797, %v800
        %vm802 = vweird.f32 %v776
        %vm803 = vweird.f32 %v797
        %vm804 = vmor %vm802, %vm803
        %v805 = vsel %vm804, %v797, %v801
        %v806 = vand.u32 2147483647, %v776
        %vm807 = vcmp.eq.f32.partialorder %v806, 8.507059e+37
        %v808 = vand.u32 %v776, 2147483648
        %v809 = vor.u32 1.1754944e-38, %v808
        %v810 = vsel %vm807, %v809, %v805
        %v811 = vrcp.pop %v779
        %v812 = vmul.f32 %v779, %v811
        %v813 = vsub.f32 1.0, %v812
        %v814 = vmul.f32 %v811, %v813
        %v815 = vadd.f32 %v811, %v814
        %vm816 = vweird.f32 %v779
        %vm817 = vweird.f32 %v811
        %vm818 = vmor %vm816, %vm817
        %v819 = vsel %vm818, %v811, %v815
        %v820 = vand.u32 2147483647, %v779
        %vm821 = vcmp.eq.f32.partialorder %v820, 8.507059e+37
        %v822 = vand.u32 %v779, 2147483648
        %v823 = vor.u32 1.1754944e-38, %v822
        %v824 = vsel %vm821, %v823, %v819
        %v825 = vrcp.pop %v782
        %v826 = vmul.f32 %v782, %v825
        %v827 = vsub.f32 1.0, %v826
        %v828 = vmul.f32 %v825, %v827
        %v829 = vadd.f32 %v825, %v828
        %vm830 = vweird.f32 %v782
        %vm831 = vweird.f32 %v825
        %vm832 = vmor %vm830, %vm831
        %v833 = vsel %vm832, %v825, %v829
        %v834 = vand.u32 2147483647, %v782
        %vm835 = vcmp.eq.f32.partialorder %v834, 8.507059e+37
        %v836 = vand.u32 %v782, 2147483648
        %v837 = vor.u32 1.1754944e-38, %v836
        %v838 = vsel %vm835, %v837, %v833
        %v839 = vmul.f32 %v764, %v796
        %v840 = vmul.f32 %v766, %v810
        %v841 = vmul.f32 %v768, %v824
        %v842 = vmul.f32 %v770, %v838
        %v843 = vpack.c.bf16 %v839, %v839
        %v844 = vpack.c.bf16 %v840, %v840
        %v845 = vpack.c.bf16 %v841, %v841
        %v846 = vpack.c.bf16 %v842, %v842
        %v848 = vsel %vm569, %v843, 0
        %v851 = vsel %vm576, %v653, 0
        %853 = vmatpush.bf16.msra.mxu0 0
        %854 = vmatpush.bf16.msra.mxu0 0
        %855 = vmatpush.bf16.msra.mxu0 0
        %856 = vmatpush.bf16.msra.mxu0 0
        %857 = vmatpush.bf16.msra.mxu0 0
        %858 = vmatpush.bf16.msra.mxu0 0
        %859 = vmatpush.bf16.msra.mxu0 0
        %860 = vmatpush.bf16.msra.mxu0 %v851
        %861 = vmatmul.bf16.gmra.mxu0 %v848
        %v862 = vpop.f32.mrf.mxu0
        %v863 = vadd.f32 0.0, %v862
        %v864 = vpop.f32.mrf.mxu0
        %865 = vdwg.mxu0
        %v867 = vsel %vm569, %v844, 0
        %v870 = vsel %vm576, %v654, 0
        %872 = vmatpush.bf16.msra.mxu0 0
        %873 = vmatpush.bf16.msra.mxu0 0
        %874 = vmatpush.bf16.msra.mxu0 0
        %875 = vmatpush.bf16.msra.mxu0 0
        %876 = vmatpush.bf16.msra.mxu0 0
        %877 = vmatpush.bf16.msra.mxu0 0
        %878 = vmatpush.bf16.msra.mxu0 0
        %879 = vmatpush.bf16.msra.mxu0 %v870
        %880 = vmatmul.bf16.gmra.mxu0 %v867
        %v881 = vpop.f32.mrf.mxu0
        %v882 = vadd.f32 0.0, %v881
        %v883 = vpop.f32.mrf.mxu0
        %884 = vdwg.mxu0
        %v886 = vsel %vm569, %v845, 0
        %v889 = vsel %vm576, %v655, 0
        %891 = vmatpush.bf16.msra.mxu0 0
        %892 = vmatpush.bf16.msra.mxu0 0
        %893 = vmatpush.bf16.msra.mxu0 0
        %894 = vmatpush.bf16.msra.mxu0 0
        %895 = vmatpush.bf16.msra.mxu0 0
        %896 = vmatpush.bf16.msra.mxu0 0
        %897 = vmatpush.bf16.msra.mxu0 0
        %898 = vmatpush.bf16.msra.mxu0 %v889
        %899 = vmatmul.bf16.gmra.mxu0 %v886
        %v900 = vpop.f32.mrf.mxu0
        %v901 = vadd.f32 0.0, %v900
        %v902 = vpop.f32.mrf.mxu0
        %903 = vdwg.mxu0
        %v905 = vsel %vm569, %v846, 0
        %v908 = vsel %vm576, %v656, 0
        %910 = vmatpush.bf16.msra.mxu0 0
        %911 = vmatpush.bf16.msra.mxu0 0
        %912 = vmatpush.bf16.msra.mxu0 0
        %913 = vmatpush.bf16.msra.mxu0 0
        %914 = vmatpush.bf16.msra.mxu0 0
        %915 = vmatpush.bf16.msra.mxu0 0
        %916 = vmatpush.bf16.msra.mxu0 0
        %917 = vmatpush.bf16.msra.mxu0 %v908
        %918 = vmatmul.bf16.gmra.mxu0 %v905
        %v919 = vpop.f32.mrf.mxu0
        %v920 = vadd.f32 0.0, %v919
        %v921 = vpop.f32.mrf.mxu0
        %922 = vdwg.mxu0
        %v923 = vpack.c.bf16 %v863, %v863
        %v924 = vpack.c.bf16 %v882, %v882
        %v925 = vpack.c.bf16 %v901, %v901
        %v926 = vpack.c.bf16 %v920, %v920
        %v927 = vld [vmem:[%s7] sm:$0xf]
        %v928 = vld [vmem:[%s7 + $0x4] sm:$0xf]
        %v929 = vld [vmem:[%s7 + $0x8] sm:$0xf]
        %v930 = vld [vmem:[%s7 + $0xc] sm:$0xf]
        %v932 = vsel %vm569, %v923, 0
        %v935 = vsel %vm576, %v927, 0
        %937 = vmatpush.bf16.msra.mxu0 0
        %938 = vmatpush.bf16.msra.mxu0 0
        %939 = vmatpush.bf16.msra.mxu0 0
        %940 = vmatpush.bf16.msra.mxu0 0
        %941 = vmatpush.bf16.msra.mxu0 0
        %942 = vmatpush.bf16.msra.mxu0 0
        %943 = vmatpush.bf16.msra.mxu0 0
        %944 = vmatpush.bf16.msra.mxu0 %v935
        %945 = vmatmul.bf16.gmra.mxu0 %v932
        %v946 = vpop.f32.mrf.mxu0
        %v947 = vadd.f32 0.0, %v946
        %v948 = vpop.f32.mrf.mxu0
        %949 = vdwg.mxu0
        %v951 = vsel %vm569, %v924, 0
        %v954 = vsel %vm576, %v928, 0
        %956 = vmatpush.bf16.msra.mxu0 0
        %957 = vmatpush.bf16.msra.mxu0 0
        %958 = vmatpush.bf16.msra.mxu0 0
        %959 = vmatpush.bf16.msra.mxu0 0
        %960 = vmatpush.bf16.msra.mxu0 0
        %961 = vmatpush.bf16.msra.mxu0 0
        %962 = vmatpush.bf16.msra.mxu0 0
        %963 = vmatpush.bf16.msra.mxu0 %v954
        %964 = vmatmul.bf16.gmra.mxu0 %v951
        %v965 = vpop.f32.mrf.mxu0
        %v966 = vadd.f32 0.0, %v965
        %v967 = vpop.f32.mrf.mxu0
        %968 = vdwg.mxu0
        %v970 = vsel %vm569, %v925, 0
        %v973 = vsel %vm576, %v929, 0
        %975 = vmatpush.bf16.msra.mxu0 0
        %976 = vmatpush.bf16.msra.mxu0 0
        %977 = vmatpush.bf16.msra.mxu0 0
        %978 = vmatpush.bf16.msra.mxu0 0
        %979 = vmatpush.bf16.msra.mxu0 0
        %980 = vmatpush.bf16.msra.mxu0 0
        %981 = vmatpush.bf16.msra.mxu0 0
        %982 = vmatpush.bf16.msra.mxu0 %v973
        %983 = vmatmul.bf16.gmra.mxu0 %v970
        %v984 = vpop.f32.mrf.mxu0
        %v985 = vadd.f32 0.0, %v984
        %v986 = vpop.f32.mrf.mxu0
        %987 = vdwg.mxu0
        %v989 = vsel %vm569, %v926, 0
        %v992 = vsel %vm576, %v930, 0
        %994 = vmatpush.bf16.msra.mxu0 0
        %995 = vmatpush.bf16.msra.mxu0 0
        %996 = vmatpush.bf16.msra.mxu0 0
        %997 = vmatpush.bf16.msra.mxu0 0
        %998 = vmatpush.bf16.msra.mxu0 0
        %999 = vmatpush.bf16.msra.mxu0 0
        %1000 = vmatpush.bf16.msra.mxu0 0
        %1001 = vmatpush.bf16.msra.mxu0 %v992
        %1002 = vmatmul.bf16.gmra.mxu0 %v989
        %v1003 = vpop.f32.mrf.mxu0
        %v1004 = vadd.f32 0.0, %v1003
        %v1005 = vpop.f32.mrf.mxu0
        %1006 = vdwg.mxu0
        %v1007 = vsel %vm489, %v947, 0.0
        %v1008 = vsel %vm489, %v966, 0.0
        %v1009 = vadd.f32 %v1007, %v1008
        %v1010 = vsel %vm489, %v985, 0.0
        %v1011 = vadd.f32 %v1009, %v1010
        %v1012 = vsel %vm489, %v1004, 0.0
        %v1013 = vadd.f32 %v1011, %v1012
        %v1014 = vadd.f32 %v484, %v1013
        %v1015 = vsel %vm489, %v1014, 0.0
        %1016 = vadd.xlane.f32.xlu0 %v1015
        %v1017 = vpop.xlane.xlu0 %1016
        %v1018 = vmul.f32 %v1017, %v499
        %v1019 = vsub.f32 %v1014, %v1018
        %v1020 = vmul.f32 %v1019, %v1019
        %v1021 = vsel %vm489, %v1020, 0.0
        %1022 = vadd.xlane.f32.xlu0 %v1021
        %v1023 = vpop.xlane.xlu0 %1022
        %v1024 = vmul.f32 %v1023, %v499
        %v1025 = vadd.f32 %v1024, 1e-05
        %v1026 = vrsqrt.pop %v1025
        %v1027 = vmul.f32 %v1026, %v1025
        %v1028 = vmul.f32 %v1027, %v1026
        %v1029 = vmul.f32 0.5, %v1028
        %v1030 = vsub.f32 1.5, %v1029
        %v1031 = vmul.f32 %v1026, %v1030
        %vm1032 = vweird.f32 %v1025
        %vm1033 = vweird.f32 %v1026
        %vm1034 = vmor %vm1032, %vm1033
        %v1035 = vsel %vm1034, %v1026, %v1031
        %v1036 = vmul.f32 %v1019, %v1035
        %v1037 = vld [vmem:[%s8] sm:$0x1]
        %v1039 = vperm.slane %v1037, 0
        %v1041 = vmul.f32 %v1036, %v1039
        %v1042 = vld [vmem:[%s9] sm:$0x1]
        %v1044 = vperm.slane %v1042, 0
        %v1046 = vadd.f32 %v1041, %v1044
        %v1047 = vpack.c.bf16 %v1046, %v1046
        %v1048 = vld [vmem:[%s10] sm:$0xf]
        %v1049 = vld [vmem:[%s10 + $0x4] sm:$0xf]
        %v1050 = vld [vmem:[%s10 + $0x8] sm:$0xf]
        %v1051 = vld [vmem:[%s10 + $0xc] sm:$0xf]
        %v1052 = vld [vmem:[%s11] sm:$0x1]
        %v1054 = vperm.slane %v1052, 0
        %v1060 = vunpack.c.l.b16 %v1048
        %v1061 = vunpack.c.l.b16 %v1049
        %v1062 = vunpack.c.l.b16 %v1050
        %v1063 = vunpack.c.l.b16 %v1051
        %v1064 = vpack.c.b16 %v1061, %v1060
        %v1065 = vpack.c.b16 %v1063, %v1062
        %v1069 = vsel %vm489, %v1047, 0
        %1071 = vmatpush.bf16.msra.mxu0 0
        %1072 = vmatpush.bf16.msra.mxu0 0
        %1073 = vmatpush.bf16.msra.mxu0 0
        %1074 = vmatpush.bf16.msra.mxu0 0
        %1075 = vmatpush.bf16.msra.mxu0 0
        %1076 = vmatpush.bf16.msra.mxu0 0
        %1077 = vmatpush.bf16.msra.mxu0 %v1065
        %1078 = vmatpush.bf16.msra.mxu0 %v1064
        %1079 = vmatmul.bf16.gmra.mxu0 %v1069
        %v1080 = vpop.f32.mrf.mxu0
        %v1081 = vadd.f32 %v1054, %v1080
        %v1082 = vpop.f32.mrf.mxu0
        %1083 = vdwg.mxu0
        %v1084 = vmax.f32 %v1081, 0.0
        %v1085 = vpack.c.bf16 %v1084, %v1084
        %v1086 = vld [vmem:[%s12] sm:$0xf]
        %v1087 = vld [vmem:[%s12 + $0x4] sm:$0xf]
        %v1088 = vld [vmem:[%s12 + $0x8] sm:$0xf]
        %v1089 = vld [vmem:[%s12 + $0xc] sm:$0xf]
        %v1090 = vld [vmem:[%s12 + $0x10] sm:$0xf]
        %v1091 = vld [vmem:[%s12 + $0x14] sm:$0xf]
        %v1092 = vld [vmem:[%s12 + $0x18] sm:$0xf]
        %v1093 = vld [vmem:[%s12 + $0x1c] sm:$0xf]
        %v1094 = vld [vmem:[%s12 + $0x20] sm:$0xf]
        %v1095 = vld [vmem:[%s12 + $0x24] sm:$0xf]
        %v1096 = vld [vmem:[%s12 + $0x28] sm:$0xf]
        %v1097 = vld [vmem:[%s12 + $0x2c] sm:$0xf]
        %v1098 = vld [vmem:[%s12 + $0x30] sm:$0xf]
        %v1099 = vld [vmem:[%s12 + $0x34] sm:$0xf]
        %v1100 = vld [vmem:[%s12 + $0x38] sm:$0xf]
        %v1101 = vld [vmem:[%s12 + $0x3c] sm:$0xf]
        %v1102 = vld [vmem:[%s13] sm:$0x1]
        %v1104 = vperm.slane %v1102, 0
        %v1122 = vunpack.c.l.b16 %v1086
        %v1123 = vunpack.c.l.b16 %v1087
        %v1124 = vunpack.c.l.b16 %v1088
        %v1125 = vunpack.c.l.b16 %v1089
        %v1126 = vunpack.c.l.b16 %v1090
        %v1127 = vunpack.c.l.b16 %v1091
        %v1128 = vunpack.c.l.b16 %v1092
        %v1129 = vunpack.c.l.b16 %v1093
        %v1130 = vunpack.c.l.b16 %v1094
        %v1131 = vunpack.c.l.b16 %v1095
        %v1132 = vunpack.c.l.b16 %v1096
        %v1133 = vunpack.c.l.b16 %v1097
        %v1134 = vunpack.c.l.b16 %v1098
        %v1135 = vunpack.c.l.b16 %v1099
        %v1136 = vunpack.c.l.b16 %v1100
        %v1137 = vunpack.c.l.b16 %v1101
        %v1138 = vpack.c.b16 %v1123, %v1122
        %v1139 = vpack.c.b16 %v1125, %v1124
        %v1140 = vpack.c.b16 %v1127, %v1126
        %v1141 = vpack.c.b16 %v1129, %v1128
        %v1142 = vpack.c.b16 %v1131, %v1130
        %v1143 = vpack.c.b16 %v1133, %v1132
        %v1144 = vpack.c.b16 %v1135, %v1134
        %v1145 = vpack.c.b16 %v1137, %v1136
        %1154 = vmatpush.bf16.msra.mxu0 %v1145
        %1155 = vmatpush.bf16.msra.mxu0 %v1144
        %1156 = vmatpush.bf16.msra.mxu0 %v1143
        %1157 = vmatpush.bf16.msra.mxu0 %v1142
        %1158 = vmatpush.bf16.msra.mxu0 %v1141
        %1159 = vmatpush.bf16.msra.mxu0 %v1140
        %1160 = vmatpush.bf16.msra.mxu0 %v1139
        %1161 = vmatpush.bf16.msra.mxu0 %v1138
        %1162 = vmatmul.bf16.gmra.mxu0 %v1085
        %v1163 = vpop.f32.mrf.mxu0
        %v1164 = vadd.f32 %v1104, %v1163
        %v1165 = vpop.f32.mrf.mxu0
        %1166 = vdwg.mxu0
        %v1167 = vadd.f32 %v1014, %v1164
        %1168 = vst.msk [vmem:[%s473] sm:$0xff] %vm489, %v1167
        %s1169 = sand.u32 %s340, 1
        %s1170 = scalar_lea.sflag [#allocation3], %s1169
        %s1171 = sand.u32 %s340, 1
        %s1172 = smul.addr %s1171, 8
        %s1173 = scalar_lea.vmem [#allocation2], %s1172
        // Predicated region
        $region77: #{casual_attention_block.1} parent=75 // pred_check
          %p1174 = pneg %p350
        $region78: #{casual_attention_block.1} parent=75 // pred_check_branch
          %1176 = sbr.rel (%p1174) target = $region80
        $region79: #{casual_attention_block.1} parent=75 // pred_region
          %1178 = vsyncadd %s1170, 0
          %s1179 = smul.addr %s28, 8
          %s1180 = scalar_lea.hbm %s14, %s1179
          %s1182 = sshll.u32 %s1173, 4
          %s1183 = int_to_ptr.vmem [resolvable:$true] %s1182
          %s1184 = sshll.u32 %s1180, 4
          %s1185 = int_to_ptr.hbm [resolvable:$true] %s1184
          %1187 = dma.vmem_to_hbm [thread:$0]  %s1183, 128, %s1185, %s1170
        $region80: #{casual_attention_block.1} parent=75 // pred_fallthru
          _
      $region76: #{casual_attention_block.1} parent=5 // pred_fallthru
        _
      %p1188 = scmp.le.s32.totalorder 2, %s23
      // Predicated region
      $region81: #{casual_attention_block.1} parent=5 // pred_check
        %p1189 = pneg %p1188
      $region82: #{casual_attention_block.1} parent=5 // pred_check_branch
        %1191 = sbr.rel (%p1189) target = $region84
      $region83: #{casual_attention_block.1} parent=5 // pred_region
        %s1192 = ssub.s32 %s23, 2
        // Predicated region
        $region85: #{casual_attention_block.1} parent=83 // pred_check
          %p1193 = pneg %p356
        $region86: #{casual_attention_block.1} parent=83 // pred_check_branch
          %1195 = sbr.rel (%p1193) target = $region88
        $region87: #{casual_attention_block.1} parent=83 // pred_region
          %s1196 = sand.u32 %s341, 1
          %s1197 = scalar_lea.sflag [#allocation3], %s1196
          %s1198 = sand.u32 %s341, 1
          %s1199 = smul.addr %s1198, 8
          %s1200 = scalar_lea.vmem [#allocation2], %s1199
          %1202 = dma.done %s1197, 128
        $region88: #{casual_attention_block.1} parent=83 // pred_fallthru
          _
      $region84: #{casual_attention_block.1} parent=5 // pred_fallthru
        _
    $region6: #{casual_attention_block.1} parent=1 // loop_footer
      %s27 = sadd.s32 1, %s23
    $region7: #{casual_attention_block.1} parent=1 // loop_footer_branch
      %22 = sbr.rel target = $region3
    $region8: #{casual_attention_block.1} parent=1 // loop_exit
      _
    %1203 = vsyncpa [#allocation3], 1
    %s1204 = scalar_lea.sflag [#allocation3], 1
    %1205 = vsyncpa %s1204, 1

</llo_original>
